<compile_context>
chip_gen: v7x
topology: tpu7x:2x2x1
jax: 0.10.0
libtpu: 0.0.40
codegen_flags: <defaults>
</compile_context>

<pallas_src>
import functools
import math

import jax
import jax.numpy as jnp
import numpy as np
from jax.experimental import pallas as pl
from jax.experimental.pallas import tpu as pltpu


# ---------------------------------------------------------------------------
# Helpers
# ---------------------------------------------------------------------------
def _pick_tile(dim, target, unit):
    """Largest multiple of `unit` <= target that evenly divides dim; else full dim."""
    if dim % unit == 0:
        t = min((target // unit) * unit, dim)
        while t >= unit:
            if dim % t == 0:
                return t
            t -= unit
    return dim


def _vmem_limit_bytes():
    """Raise the scoped VMEM limit on chips we recognize; otherwise keep default."""
    try:
        kind = jax.devices()[0].device_kind.lower()
    except Exception:  # pragma: no cover
        return None
    if "v7" in kind:
        return 48 * 1024 * 1024
    if "v5" in kind or "v6" in kind:
        return 96 * 1024 * 1024
    return None


def _compiler_params(dimension_semantics):
    return pltpu.CompilerParams(dimension_semantics=dimension_semantics,
                                vmem_limit_bytes=_vmem_limit_bytes())


# ---------------------------------------------------------------------------
# Pallas kernels
# ---------------------------------------------------------------------------
def attn_block_kernel(x_ref, rms1_ref, wq_ref, wk_ref, wv_ref, wo_ref,
                      cos_ref, sin_ref, out_ref,
                      *, num_q_heads, num_kv_heads, head_dim, eps):
    """RMSNorm1 + QKV + RoPE + GQA attention + o_proj + residual, one batch row."""
    n_rep = num_q_heads // num_kv_heads

    x = x_ref[0].astype(jnp.float32)                          # (S, H)
    S, H = x.shape
    sqrt_h = math.sqrt(H)
    inv_sqrt_hd = 1.0 / math.sqrt(head_dim)

    # RMSNorm1 (PyTorch variant: x * w / (||x||/sqrt(H) + eps))
    nrm1 = jnp.sqrt(jnp.sum(x * x, axis=-1, keepdims=True))
    h1 = x * (rms1_ref[...].astype(jnp.float32) / (nrm1 / sqrt_h + eps))
    h1_bf = h1.astype(jnp.bfloat16)

    # QKV projections (bf16 operands, f32 accumulation on the MXU).
    q = jnp.dot(h1_bf, wq_ref[...], preferred_element_type=jnp.float32)  # (S, nq*hd)
    k = jnp.dot(h1_bf, wk_ref[...], preferred_element_type=jnp.float32)  # (S, nkv*hd)
    v = jnp.dot(h1_bf, wv_ref[...], preferred_element_type=jnp.float32)  # (S, nkv*hd)

    cos = cos_ref[...][:, None, :]                            # (S, 1, hd)
    sin = sin_ref[...][:, None, :]

    def rope(t):  # t: (S, nh, hd), rotation batched over all heads at once
        t1 = t[..., : head_dim // 2]
        t2 = t[..., head_dim // 2:]
        rot = jnp.concatenate([-t2, t1], axis=-1)
        return t * cos + rot * sin

    # Fold 1/sqrt(head_dim) into q (RoPE is linear, so scaling commutes).
    q = q.reshape(S, num_q_heads, head_dim) * inv_sqrt_hd
    k = k.reshape(S, num_kv_heads, head_dim)
    v = v.reshape(S, num_kv_heads, head_dim)

    q = rope(q)                                               # batched over q heads
    k = rope(k)                                               # once per KV head only

    # Group query heads by their shared KV head so each GQA group is a single
    # batched matmul with n_rep*S rows (better MXU fill than per-head dots).
    q_g = jnp.transpose(q, (1, 0, 2)).reshape(num_kv_heads, n_rep * S, head_dim)
    k_g = jnp.transpose(k, (1, 0, 2))                         # (nkv, S, hd)
    v_g = jnp.transpose(v, (1, 0, 2))                         # (nkv, S, hd)

    scores = jnp.einsum("gqd,gkd->gqk",
                        q_g.astype(jnp.bfloat16), k_g.astype(jnp.bfloat16),
                        preferred_element_type=jnp.float32)   # (nkv, n_rep*S, S)
    scores = scores - jnp.max(scores, axis=-1, keepdims=True)
    p = jnp.exp(scores)
    p = p * pl.reciprocal(jnp.sum(p, axis=-1, keepdims=True), approx=True)

    attn = jnp.einsum("gqk,gkd->gqd",
                      p.astype(jnp.bfloat16), v_g.astype(jnp.bfloat16),
                      preferred_element_type=jnp.float32)     # (nkv, n_rep*S, hd)
    attn = attn.reshape(num_q_heads, S, head_dim)
    attn = jnp.transpose(attn, (1, 0, 2)).reshape(S, H)

    attn_o = jnp.dot(attn.astype(jnp.bfloat16), wo_ref[...],
                     preferred_element_type=jnp.float32)
    out_ref[0] = (x + attn_o).astype(out_ref.dtype)           # residual 1

    # TODO(synk): for long S, tile attention over KV blocks (flash-style online
    # softmax) and add a seq-parallel grid axis so both v7x TensorCores get work.


def mlp_block_kernel(h_ref, rms2_ref, wg_ref, wu_ref, wd_ref, out_ref, acc_ref,
                     *, eps):
    """RMSNorm2 + SwiGLU MLP + residual, tiled over the intermediate dim M."""
    m_idx = pl.program_id(2)

    h_res = h_ref[0].astype(jnp.float32)                      # (tile_s, H)
    H = h_res.shape[-1]
    nrm = jnp.sqrt(jnp.sum(h_res * h_res, axis=-1, keepdims=True))
    h2 = h_res * (rms2_ref[...].astype(jnp.float32) / (nrm / math.sqrt(H) + eps))
    h2_bf = h2.astype(jnp.bfloat16)

    @pl.when(m_idx == 0)
    def _():
        acc_ref[...] = jnp.zeros_like(acc_ref)

    gate = jnp.dot(h2_bf, wg_ref[...], preferred_element_type=jnp.float32)
    up = jnp.dot(h2_bf, wu_ref[...], preferred_element_type=jnp.float32)
    act = gate * jax.nn.sigmoid(gate) * up                    # SiLU(gate) * up
    acc_ref[...] += jnp.dot(act.astype(jnp.bfloat16), wd_ref[...],
                            preferred_element_type=jnp.float32)

    @pl.when(m_idx == pl.num_programs(2) - 1)
    def _():
        out_ref[0] = (h_res + acc_ref[...]).astype(out_ref.dtype)  # residual 2


def final_head_kernel(x_ref, wnorm_ref, whead_ref, out_ref, *, eps):
    """Final RMSNorm + lm_head, tiled over (seq, vocab)."""
    x = x_ref[0].astype(jnp.float32)                          # (tile_s, H)
    H = x.shape[-1]
    nrm = jnp.sqrt(jnp.sum(x * x, axis=-1, keepdims=True))
    h = x * (wnorm_ref[...].astype(jnp.float32) / (nrm / math.sqrt(H) + eps))
    out_ref[0] = jnp.dot(h.astype(jnp.bfloat16), whead_ref[...],
                         preferred_element_type=jnp.float32).astype(out_ref.dtype)


# ---------------------------------------------------------------------------
# Wrappers (pallas_call plumbing)
# ---------------------------------------------------------------------------
def run_attention(x, blk, cos, sin, *, num_q_heads, num_kv_heads, head_dim, eps):
    B, S, H = x.shape
    kv_dim = num_kv_heads * head_dim
    kernel = functools.partial(attn_block_kernel,
                               num_q_heads=num_q_heads,
                               num_kv_heads=num_kv_heads,
                               head_dim=head_dim, eps=eps)
    w = lambda shp: pl.BlockSpec(shp, lambda b: (0,) * len(shp))
    return pl.pallas_call(
        kernel,
        out_shape=jax.ShapeDtypeStruct((B, S, H), jnp.bfloat16),
        grid=(B,),
        in_specs=[
            pl.BlockSpec((1, S, H), lambda b: (b, 0, 0)),   # x
            w((1, H)),                                      # rms1
            w((H, H)),                                      # wq
            w((H, kv_dim)),                                 # wk
            w((H, kv_dim)),                                 # wv
            w((H, H)),                                      # wo
            w((S, head_dim)),                               # cos
            w((S, head_dim)),                               # sin
        ],
        out_specs=pl.BlockSpec((1, S, H), lambda b: (b, 0, 0)),
        compiler_params=_compiler_params(("parallel",)),
    )(x, blk["rms1"], blk["wq"], blk["wk"], blk["wv"], blk["wo"], cos, sin)


def run_mlp(h, blk, *, eps, tile_s, tile_m):
    B, S, H = h.shape
    M = blk["wg"].shape[1]
    n_s, n_m = S // tile_s, M // tile_m
    return pl.pallas_call(
        functools.partial(mlp_block_kernel, eps=eps),
        out_shape=jax.ShapeDtypeStruct((B, S, H), jnp.bfloat16),
        grid=(B, n_s, n_m),                                  # M (reduction) last
        in_specs=[
            pl.BlockSpec((1, tile_s, H), lambda b, s, m: (b, s, 0)),  # h_resid1
            pl.BlockSpec((1, H), lambda b, s, m: (0, 0)),             # rms2
            pl.BlockSpec((H, tile_m), lambda b, s, m: (0, m)),        # wg
            pl.BlockSpec((H, tile_m), lambda b, s, m: (0, m)),        # wu
            pl.BlockSpec((tile_m, H), lambda b, s, m: (m, 0)),        # wd
        ],
        out_specs=pl.BlockSpec((1, tile_s, H), lambda b, s, m: (b, s, 0)),
        scratch_shapes=[pltpu.VMEM((tile_s, H), jnp.float32)],
        compiler_params=_compiler_params(("parallel", "parallel", "arbitrary")),
    )(h, blk["rms2"], blk["wg"], blk["wu"], blk["wd"])


def run_final_head(x, wnorm, whead, *, eps, tile_s, tile_v):
    B, S, H = x.shape
    V = whead.shape[1]
    n_s, n_v = S // tile_s, V // tile_v
    return pl.pallas_call(
        functools.partial(final_head_kernel, eps=eps),
        out_shape=jax.ShapeDtypeStruct((B, S, V), jnp.float32),
        grid=(B, n_s, n_v),
        in_specs=[
            pl.BlockSpec((1, tile_s, H), lambda b, s, v: (b, s, 0)),
            pl.BlockSpec((1, H), lambda b, s, v: (0, 0)),
            pl.BlockSpec((H, tile_v), lambda b, s, v: (0, v)),
        ],
        out_specs=pl.BlockSpec((1, tile_s, tile_v), lambda b, s, v: (b, s, v)),
        compiler_params=_compiler_params(("parallel", "parallel", "parallel")),
    )(x, wnorm, whead)


# ---------------------------------------------------------------------------
# Model glue: params, RoPE table, forward
# ---------------------------------------------------------------------------
def precompute_rope(head_dim, seq_len, theta=10000.0):
    freqs = 1.0 / theta ** (jnp.arange(0, head_dim, 2, dtype=jnp.float32) / head_dim)
    t = jnp.arange(seq_len, dtype=jnp.float32)
    f = jnp.outer(t, freqs)                                   # (S, hd/2)
    cos = jnp.concatenate([jnp.cos(f), jnp.cos(f)], axis=-1)  # (S, hd)
    sin = jnp.concatenate([jnp.sin(f), jnp.sin(f)], axis=-1)
    return cos, sin


def init_params(key, cfg, w_dtype=jnp.bfloat16):
    V, H = cfg["vocab_size"], cfg["hidden_size"]
    L = cfg["num_hidden_layers"]
    nq, nkv = cfg["num_attention_heads"], cfg["num_key_value_heads"]
    hd = H // nq
    M = cfg["intermediate_size"]
    scale = 0.02

    def nrm(k_, shape):
        return (scale * jax.random.normal(k_, shape, dtype=jnp.float32)).astype(w_dtype)

    keys = jax.random.split(key, 2 + 7 * L)
    params = {
        "embedding": scale * jax.random.normal(keys[0], (V, H), dtype=jnp.float32),
        "whead": nrm(keys[1], (H, V)),
        "norm_w": jnp.ones((1, H), jnp.float32),
        "blocks": [],
    }
    for l in range(L):
        k = jax.random.split(keys[2 + l], 7)
        params["blocks"].append({
            "rms1": jnp.ones((1, H), jnp.float32),
            "rms2": jnp.ones((1, H), jnp.float32),
            "wq": nrm(k[0], (H, nq * hd)),
            "wk": nrm(k[1], (H, nkv * hd)),
            "wv": nrm(k[2], (H, nkv * hd)),
            "wo": nrm(k[3], (nq * hd, H)),
            "wg": nrm(k[4], (H, M)),
            "wu": nrm(k[5], (H, M)),
            "wd": nrm(k[6], (M, H)),
        })
    return params


def tinyllama_forward(params, input_ids, cfg):
    H = cfg["hidden_size"]
    nq, nkv = cfg["num_attention_heads"], cfg["num_key_value_heads"]
    hd = H // nq
    eps = cfg["rms_norm_eps"]
    M = cfg["intermediate_size"]
    V = cfg["vocab_size"]
    S = input_ids.shape[1]

    tile_s = _pick_tile(S, 256, unit=8)
    tile_m = _pick_tile(M, 512, unit=128)
    tile_v = _pick_tile(V, 2048, unit=128)

    # TODO(synk): embedding gather kept in plain JAX (data-dependent gather).
    x = jnp.take(params["embedding"], input_ids, axis=0).astype(jnp.bfloat16)  # (B,S,H)

    cos, sin = precompute_rope(hd, S, cfg["rope_theta"])      # (S, hd) f32

    for blk in params["blocks"]:
        h = run_attention(x, blk, cos, sin,
                          num_q_heads=nq, num_kv_heads=nkv,
                          head_dim=hd, eps=eps)
        x = run_mlp(h, blk, eps=eps, tile_s=tile_s, tile_m=tile_m)

    logits = run_final_head(x, params["norm_w"], params["whead"],
                            eps=eps, tile_s=tile_s, tile_v=tile_v)
    # TODO(synk): KV-cache decode path (pos is not None in PyTorch) not implemented.
    return logits


# ---------------------------------------------------------------------------
# Pure-JAX reference (mirrors the PyTorch math in f32)
# ---------------------------------------------------------------------------
def _rmsnorm_ref(x, w, eps):
    nrm = jnp.linalg.norm(x, axis=-1, keepdims=True)
    return x * (w.reshape(-1).astype(jnp.float32) / (nrm / math.sqrt(x.shape[-1]) + eps))


def reference_forward(params, input_ids, cfg):
    H = cfg["hidden_size"]
    nq, nkv = cfg["num_attention_heads"], cfg["num_key_value_heads"]
    hd = H // nq
    n_rep = nq // nkv
    eps = cfg["rms_norm_eps"]
    B, S = input_ids.shape

    f32 = lambda a: a.astype(jnp.float32)
    x = jnp.take(params["embedding"], input_ids, axis=0)
    cos, sin = precompute_rope(hd, S, cfg["rope_theta"])
    cos_b = cos[None, :, None, :]
    sin_b = sin[None, :, None, :]

    def rope(t):  # (B, S, nh, hd)
        t1 = t[..., : hd // 2]
        t2 = t[..., hd // 2:]
        rot = jnp.concatenate([-t2, t1], axis=-1)
        return t * cos_b + rot * sin_b

    for blk in params["blocks"]:
        h1 = _rmsnorm_ref(x, blk["rms1"], eps)
        q = (h1 @ f32(blk["wq"])).reshape(B, S, nq, hd)
        k = (h1 @ f32(blk["wk"])).reshape(B, S, nkv, hd)
        v = (h1 @ f32(blk["wv"])).reshape(B, S, nkv, hd)
        q, k = rope(q), rope(k)
        k = jnp.repeat(k, n_rep, axis=2)
        v = jnp.repeat(v, n_rep, axis=2)
        scores = jnp.einsum("bsqd,btqd->bqst", q, k) / math.sqrt(hd)
        p = jax.nn.softmax(scores, axis=-1)
        attn = jnp.einsum("bqst,btqd->bsqd", p, v).reshape(B, S, H)
        h_res1 = x + attn @ f32(blk["wo"])
        h2 = _rmsnorm_ref(h_res1, blk["rms2"], eps)
        gate = h2 @ f32(blk["wg"])
        up = h2 @ f32(blk["wu"])
        x = h_res1 + (jax.nn.silu(gate) * up) @ f32(blk["wd"])

    x = _rmsnorm_ref(x, params["norm_w"], eps)
    return x @ f32(params["whead"])


# ---------------------------------------------------------------------------
if __name__ == "__main__":
    cfg = dict(
        vocab_size=64,
        hidden_size=32,
        num_hidden_layers=2,
        num_attention_heads=4,
        num_key_value_heads=2,
        intermediate_size=64,
        max_position_embeddings=16,
        rope_theta=10000.0,
        rms_norm_eps=1e-5,
    )
    B, S = 2, 8

    root = jax.random.PRNGKey(0)
    k_params, k_ids = jax.random.split(root)
    params = init_params(k_params, cfg)
    input_ids = jax.random.randint(k_ids, (B, S), 0, cfg["vocab_size"],
                                   dtype=jnp.int32)

    logits = tinyllama_forward(params, input_ids, cfg)
    logits = jax.block_until_ready(logits)

    ref = reference_forward(params, input_ids, cfg)
    ref = jax.block_until_ready(ref)

    assert logits.shape == (B, S, cfg["vocab_size"])
    assert bool(jnp.isfinite(logits).all())
    # Kernel runs bf16 matmuls / bf16 residual stream; reference is f32.
    np.testing.assert_allclose(np.asarray(logits), np.asarray(ref),
                               rtol=2e-2, atol=2e-3)
    print("KERNEL_OK")
</pallas_src>

<mosaic_0001>
module attributes {stable_mosaic.version = 11 : i64} {
  func.func @attn_block_kernel(%arg0: i32, %arg1: memref<1x8x32xbf16, #tpu.memory_space<vmem>>, %arg2: memref<1x32xf32, #tpu.memory_space<vmem>>, %arg3: memref<32x32xbf16, #tpu.memory_space<vmem>>, %arg4: memref<32x16xbf16, #tpu.memory_space<vmem>>, %arg5: memref<32x16xbf16, #tpu.memory_space<vmem>>, %arg6: memref<32x32xbf16, #tpu.memory_space<vmem>>, %arg7: memref<8x8xf32, #tpu.memory_space<vmem>>, %arg8: memref<8x8xf32, #tpu.memory_space<vmem>>, %arg9: memref<1x8x32xbf16, #tpu.memory_space<vmem>>) attributes {dimension_semantics = [#tpu.dimension_semantics<parallel>], iteration_bounds = array<i64: 2>, scalar_prefetch = 0 : i64, scratch_operands = 0 : i64, tpu.core_type = #tpu.core_type<tc>, window_params = [{transform_indices = @transform_0, window_bounds = array<i64: 1, 8, 32>}, {pipeline_mode = #tpu.pipeline_mode<synchronous>, transform_indices = @transform_1, window_bounds = array<i64: 1, 32>}, {pipeline_mode = #tpu.pipeline_mode<synchronous>, transform_indices = @transform_2, window_bounds = array<i64: 32, 32>}, {pipeline_mode = #tpu.pipeline_mode<synchronous>, transform_indices = @transform_3, window_bounds = array<i64: 32, 16>}, {pipeline_mode = #tpu.pipeline_mode<synchronous>, transform_indices = @transform_4, window_bounds = array<i64: 32, 16>}, {pipeline_mode = #tpu.pipeline_mode<synchronous>, transform_indices = @transform_5, window_bounds = array<i64: 32, 32>}, {pipeline_mode = #tpu.pipeline_mode<synchronous>, transform_indices = @transform_6, window_bounds = array<i64: 8, 8>}, {pipeline_mode = #tpu.pipeline_mode<synchronous>, transform_indices = @transform_7, window_bounds = array<i64: 8, 8>}, {transform_indices = @transform_8, window_bounds = array<i64: 1, 8, 32>}]} {
    %c0 = arith.constant 0 : index
    %c0_0 = arith.constant 0 : index
    %c0_1 = arith.constant 0 : index
    %0 = vector.load %arg1[%c0, %c0_0, %c0_1] : memref<1x8x32xbf16, #tpu.memory_space<vmem>>, vector<1x8x32xbf16>
    %1 = vector.shape_cast %0 : vector<1x8x32xbf16> to vector<8x32xbf16>
    %2 = arith.extf %1 : vector<8x32xbf16> to vector<8x32xf32>
    %3 = arith.mulf %2, %2 : vector<8x32xf32>
    %cst = arith.constant dense<0.000000e+00> : vector<8xf32>
    %4 = vector.multi_reduction <add>, %3, %cst [1] : vector<8x32xf32> to vector<8xf32>
    %5 = vector.shape_cast %4 : vector<8xf32> to vector<8x1xf32>
    %6 = math.sqrt %5 : vector<8x1xf32>
    %c0_2 = arith.constant 0 : index
    %c0_3 = arith.constant 0 : index
    %7 = vector.load %arg2[%c0_2, %c0_3] : memref<1x32xf32, #tpu.memory_space<vmem>>, vector<1x32xf32>
    %cst_4 = arith.constant 5.65685415 : f32
    %8 = vector.broadcast %cst_4 : f32 to vector<8x1xf32>
    %9 = arith.divf %6, %8 : vector<8x1xf32>
    %cst_5 = arith.constant 9.99999974E-6 : f32
    %10 = vector.broadcast %cst_5 : f32 to vector<8x1xf32>
    %11 = arith.addf %9, %10 : vector<8x1xf32>
    %12 = vector.broadcast %7 : vector<1x32xf32> to vector<8x32xf32>
    %13 = vector.broadcast %11 : vector<8x1xf32> to vector<8x32xf32>
    %14 = arith.divf %12, %13 : vector<8x32xf32>
    %15 = arith.mulf %2, %14 : vector<8x32xf32>
    %16 = arith.truncf %15 : vector<8x32xf32> to vector<8x32xbf16>
    %c0_6 = arith.constant 0 : index
    %c0_7 = arith.constant 0 : index
    %17 = vector.load %arg3[%c0_6, %c0_7] : memref<32x32xbf16, #tpu.memory_space<vmem>>, vector<32x32xbf16>
    %cst_8 = arith.constant dense<0.000000e+00> : vector<8x32xf32>
    %18 = tpu.matmul %16, %17, %cst_8 {dimension_numbers = #tpu.dot_dimension_numbers<[1], [0], [0], [1], [0, 0, 1, 1], [], []>} : vector<8x32xbf16>, vector<32x32xbf16>, vector<8x32xf32> -> vector<8x32xf32>
    %c0_9 = arith.constant 0 : index
    %c0_10 = arith.constant 0 : index
    %19 = vector.load %arg4[%c0_9, %c0_10] : memref<32x16xbf16, #tpu.memory_space<vmem>>, vector<32x16xbf16>
    %cst_11 = arith.constant dense<0.000000e+00> : vector<8x16xf32>
    %20 = tpu.matmul %16, %19, %cst_11 {dimension_numbers = #tpu.dot_dimension_numbers<[1], [0], [0], [1], [0, 0, 1, 1], [], []>} : vector<8x32xbf16>, vector<32x16xbf16>, vector<8x16xf32> -> vector<8x16xf32>
    %c0_12 = arith.constant 0 : index
    %c0_13 = arith.constant 0 : index
    %21 = vector.load %arg5[%c0_12, %c0_13] : memref<32x16xbf16, #tpu.memory_space<vmem>>, vector<32x16xbf16>
    %cst_14 = arith.constant dense<0.000000e+00> : vector<8x16xf32>
    %22 = tpu.matmul %16, %21, %cst_14 {dimension_numbers = #tpu.dot_dimension_numbers<[1], [0], [0], [1], [0, 0, 1, 1], [], []>} : vector<8x32xbf16>, vector<32x16xbf16>, vector<8x16xf32> -> vector<8x16xf32>
    %c0_15 = arith.constant 0 : index
    %c0_16 = arith.constant 0 : index
    %23 = vector.load %arg7[%c0_15, %c0_16] : memref<8x8xf32, #tpu.memory_space<vmem>>, vector<8x8xf32>
    %24 = vector.shape_cast %23 : vector<8x8xf32> to vector<8x1x8xf32>
    %c0_17 = arith.constant 0 : index
    %c0_18 = arith.constant 0 : index
    %25 = vector.load %arg8[%c0_17, %c0_18] : memref<8x8xf32, #tpu.memory_space<vmem>>, vector<8x8xf32>
    %26 = vector.shape_cast %25 : vector<8x8xf32> to vector<8x1x8xf32>
    %27 = vector.shape_cast %18 : vector<8x32xf32> to vector<8x4x8xf32>
    %cst_19 = arith.constant 0.353553385 : f32
    %28 = vector.broadcast %cst_19 : f32 to vector<8x4x8xf32>
    %29 = arith.mulf %27, %28 : vector<8x4x8xf32>
    %30 = vector.shape_cast %20 : vector<8x16xf32> to vector<8x2x8xf32>
    %31 = vector.shape_cast %22 : vector<8x16xf32> to vector<8x2x8xf32>
    %32 = vector.extract_strided_slice %29 {offsets = [0, 0, 0], sizes = [8, 4, 4], strides = [1, 1, 1]} : vector<8x4x8xf32> to vector<8x4x4xf32>
    %33 = vector.extract_strided_slice %29 {offsets = [0, 0, 4], sizes = [8, 4, 4], strides = [1, 1, 1]} : vector<8x4x8xf32> to vector<8x4x4xf32>
    %cst_20 = arith.constant 0.000000e+00 : f32
    %34 = vector.broadcast %cst_20 : f32 to vector<8x4x4xf32>
    %35 = arith.subf %34, %33 : vector<8x4x4xf32>
    %36 = tpu.concatenate %35, %32 in 2 : vector<8x4x4xf32>, vector<8x4x4xf32> -> vector<8x4x8xf32>
    %37 = vector.broadcast %24 : vector<8x1x8xf32> to vector<8x4x8xf32>
    %38 = arith.mulf %29, %37 : vector<8x4x8xf32>
    %39 = vector.broadcast %26 : vector<8x1x8xf32> to vector<8x4x8xf32>
    %40 = arith.mulf %36, %39 : vector<8x4x8xf32>
    %41 = arith.addf %38, %40 : vector<8x4x8xf32>
    %42 = vector.extract_strided_slice %30 {offsets = [0, 0, 0], sizes = [8, 2, 4], strides = [1, 1, 1]} : vector<8x2x8xf32> to vector<8x2x4xf32>
    %43 = vector.extract_strided_slice %30 {offsets = [0, 0, 4], sizes = [8, 2, 4], strides = [1, 1, 1]} : vector<8x2x8xf32> to vector<8x2x4xf32>
    %cst_21 = arith.constant 0.000000e+00 : f32
    %44 = vector.broadcast %cst_21 : f32 to vector<8x2x4xf32>
    %45 = arith.subf %44, %43 : vector<8x2x4xf32>
    %46 = tpu.concatenate %45, %42 in 2 : vector<8x2x4xf32>, vector<8x2x4xf32> -> vector<8x2x8xf32>
    %47 = vector.broadcast %24 : vector<8x1x8xf32> to vector<8x2x8xf32>
    %48 = arith.mulf %30, %47 : vector<8x2x8xf32>
    %49 = vector.broadcast %26 : vector<8x1x8xf32> to vector<8x2x8xf32>
    %50 = arith.mulf %46, %49 : vector<8x2x8xf32>
    %51 = arith.addf %48, %50 : vector<8x2x8xf32>
    %52 = tpu.transpose %41, [1, 0, 2] : vector<8x4x8xf32> -> vector<4x8x8xf32>
    %53 = vector.shape_cast %52 : vector<4x8x8xf32> to vector<2x16x8xf32>
    %54 = tpu.transpose %51, [1, 0, 2] : vector<8x2x8xf32> -> vector<2x8x8xf32>
    %55 = tpu.transpose %31, [1, 0, 2] : vector<8x2x8xf32> -> vector<2x8x8xf32>
    %56 = arith.truncf %53 : vector<2x16x8xf32> to vector<2x16x8xbf16>
    %57 = arith.truncf %54 : vector<2x8x8xf32> to vector<2x8x8xbf16>
    "tpu.trace_start"() <{level = 10 : i32, message = "gqd,gkd->gqk"}> : () -> ()
    %cst_22 = arith.constant dense<0.000000e+00> : vector<2x16x8xf32>
    %58 = tpu.matmul %56, %57, %cst_22 {dimension_numbers = #tpu.dot_dimension_numbers<[2], [2], [1], [1], [0, 0, 0, 1, 1, 1], [0], [0]>} : vector<2x16x8xbf16>, vector<2x8x8xbf16>, vector<2x16x8xf32> -> vector<2x16x8xf32>
    "tpu.trace_stop"() : () -> ()
    %cst_23 = arith.constant dense<0xFF800000> : vector<2x16xf32>
    %59 = vector.multi_reduction <maximumf>, %58, %cst_23 [2] : vector<2x16x8xf32> to vector<2x16xf32>
    %60 = vector.shape_cast %59 : vector<2x16xf32> to vector<2x16x1xf32>
    %61 = vector.broadcast %60 : vector<2x16x1xf32> to vector<2x16x8xf32>
    %62 = arith.subf %58, %61 : vector<2x16x8xf32>
    %63 = math.exp %62 : vector<2x16x8xf32>
    %cst_24 = arith.constant dense<0.000000e+00> : vector<2x16xf32>
    %64 = vector.multi_reduction <add>, %63, %cst_24 [2] : vector<2x16x8xf32> to vector<2x16xf32>
    %65 = vector.shape_cast %64 : vector<2x16xf32> to vector<2x16x1xf32>
    %66 = tpu.reciprocal %65 {approx = true} : vector<2x16x1xf32> -> vector<2x16x1xf32>
    %67 = vector.broadcast %66 : vector<2x16x1xf32> to vector<2x16x8xf32>
    %68 = arith.mulf %63, %67 : vector<2x16x8xf32>
    %69 = arith.truncf %68 : vector<2x16x8xf32> to vector<2x16x8xbf16>
    %70 = arith.truncf %55 : vector<2x8x8xf32> to vector<2x8x8xbf16>
    "tpu.trace_start"() <{level = 10 : i32, message = "gqk,gkd->gqd"}> : () -> ()
    %cst_25 = arith.constant dense<0.000000e+00> : vector<2x16x8xf32>
    %71 = tpu.matmul %69, %70, %cst_25 {dimension_numbers = #tpu.dot_dimension_numbers<[2], [1], [1], [2], [0, 0, 0, 1, 1, 2], [0], [0]>} : vector<2x16x8xbf16>, vector<2x8x8xbf16>, vector<2x16x8xf32> -> vector<2x16x8xf32>
    "tpu.trace_stop"() : () -> ()
    %72 = vector.shape_cast %71 : vector<2x16x8xf32> to vector<4x8x8xf32>
    %73 = tpu.transpose %72, [1, 0, 2] : vector<4x8x8xf32> -> vector<8x4x8xf32>
    %74 = vector.shape_cast %73 : vector<8x4x8xf32> to vector<8x32xf32>
    %75 = arith.truncf %74 : vector<8x32xf32> to vector<8x32xbf16>
    %c0_26 = arith.constant 0 : index
    %c0_27 = arith.constant 0 : index
    %76 = vector.load %arg6[%c0_26, %c0_27] : memref<32x32xbf16, #tpu.memory_space<vmem>>, vector<32x32xbf16>
    %cst_28 = arith.constant dense<0.000000e+00> : vector<8x32xf32>
    %77 = tpu.matmul %75, %76, %cst_28 {dimension_numbers = #tpu.dot_dimension_numbers<[1], [0], [0], [1], [0, 0, 1, 1], [], []>} : vector<8x32xbf16>, vector<32x32xbf16>, vector<8x32xf32> -> vector<8x32xf32>
    %78 = arith.addf %2, %77 : vector<8x32xf32>
    %79 = arith.truncf %78 : vector<8x32xf32> to vector<8x32xbf16>
    %c0_29 = arith.constant 0 : index
    %c0_30 = arith.constant 0 : index
    %c0_31 = arith.constant 0 : index
    %80 = vector.load %arg9[%c0_29, %c0_30, %c0_31] : memref<1x8x32xbf16, #tpu.memory_space<vmem>>, vector<1x8x32xbf16>
    %81 = vector.shape_cast %80 : vector<1x8x32xbf16> to vector<8x32xbf16>
    %82 = vector.shape_cast %79 : vector<8x32xbf16> to vector<1x8x32xbf16>
    tpu.vector_store %arg9[%c0_29, %c0_30, %c0_31], %82 {strides = array<i32>} : memref<1x8x32xbf16, #tpu.memory_space<vmem>>, vector<1x8x32xbf16>,
    return
  }
  func.func @transform_0(%arg0: i32) -> (i32, i32, i32) {
    %c0_i32 = arith.constant 0 : i32
    %c0_i32_0 = arith.constant 0 : i32
    %c0_i32_1 = arith.constant 0 : i32
    return %arg0, %c0_i32, %c0_i32_0 : i32, i32, i32
  }
  func.func @transform_1(%arg0: i32) -> (i32, i32) {
    %c0_i32 = arith.constant 0 : i32
    %c0_i32_0 = arith.constant 0 : i32
    %c0_i32_1 = arith.constant 0 : i32
    return %c0_i32, %c0_i32_0 : i32, i32
  }
  func.func @transform_2(%arg0: i32) -> (i32, i32) {
    %c0_i32 = arith.constant 0 : i32
    %c0_i32_0 = arith.constant 0 : i32
    %c0_i32_1 = arith.constant 0 : i32
    return %c0_i32, %c0_i32_0 : i32, i32
  }
  func.func @transform_3(%arg0: i32) -> (i32, i32) {
    %c0_i32 = arith.constant 0 : i32
    %c0_i32_0 = arith.constant 0 : i32
    %c0_i32_1 = arith.constant 0 : i32
    return %c0_i32, %c0_i32_0 : i32, i32
  }
  func.func @transform_4(%arg0: i32) -> (i32, i32) {
    %c0_i32 = arith.constant 0 : i32
    %c0_i32_0 = arith.constant 0 : i32
    %c0_i32_1 = arith.constant 0 : i32
    return %c0_i32, %c0_i32_0 : i32, i32
  }
  func.func @transform_5(%arg0: i32) -> (i32, i32) {
    %c0_i32 = arith.constant 0 : i32
    %c0_i32_0 = arith.constant 0 : i32
    %c0_i32_1 = arith.constant 0 : i32
    return %c0_i32, %c0_i32_0 : i32, i32
  }
  func.func @transform_6(%arg0: i32) -> (i32, i32) {
    %c0_i32 = arith.constant 0 : i32
    %c0_i32_0 = arith.constant 0 : i32
    %c0_i32_1 = arith.constant 0 : i32
    return %c0_i32, %c0_i32_0 : i32, i32
  }
  func.func @transform_7(%arg0: i32) -> (i32, i32) {
    %c0_i32 = arith.constant 0 : i32
    %c0_i32_0 = arith.constant 0 : i32
    %c0_i32_1 = arith.constant 0 : i32
    return %c0_i32, %c0_i32_0 : i32, i32
  }
  func.func @transform_8(%arg0: i32) -> (i32, i32, i32) {
    %c0_i32 = arith.constant 0 : i32
    %c0_i32_0 = arith.constant 0 : i32
    %c0_i32_1 = arith.constant 0 : i32
    return %arg0, %c0_i32, %c0_i32_0 : i32, i32, i32
  }
}

</mosaic_0001>

<llo_original>
// kernel: tpu_custom_call.1
$region0: #{tpu_custom_call.1}
  #allocation0 [shape = 'u32[]', space=smem, size = 0x4, offset = 0x4, fixed_abs, tag = 'smem constant byte address 0x4 - core index']
  #allocation1 [shape = 'u32[144,128]{1,0:T(1,128)}', space=vmem, size = 0x12000, scoped, tag = 'internal scratch']
  %s0 = inlined_call_operand.vmem [shape: bf16[2,8,32], index: 0, kind: input, shape index: {}]
  %s1 = inlined_call_operand.vmem [shape: f32[1,32], index: 1, kind: input, shape index: {}]
  %s2 = inlined_call_operand.vmem [shape: bf16[32,32], index: 2, kind: input, shape index: {}]
  %s3 = inlined_call_operand.vmem [shape: bf16[32,16], index: 3, kind: input, shape index: {}]
  %s4 = inlined_call_operand.vmem [shape: bf16[32,16], index: 4, kind: input, shape index: {}]
  %s5 = inlined_call_operand.vmem [shape: bf16[32,32], index: 5, kind: input, shape index: {}]
  %s6 = inlined_call_operand.vmem [shape: f32[8,8], index: 6, kind: input, shape index: {}]
  %s7 = inlined_call_operand.vmem [shape: f32[8,8], index: 7, kind: input, shape index: {}]
  %s8 = inlined_call_operand.hbm [shape: bf16[2,8,32], index: 8, kind: output, shape index: {}]
  %s9 = sld [smem:[#allocation0]]
  $region65: #{tpu_custom_call.1} parent=0
    _
  %s11 = ssub.s32 1, %s9
  %s12 = scalar_select 0, %s11, %s9
  $region1: #{tpu_custom_call.1} parent=0
    #allocation2 [shape = 'u8[4096]{0}', space=vmem, size = 0x1000, scoped, tag = 'output window, operand 0']
    #allocation3 [shape = 's32[2]{0}', space=sflag, size = 0x8, scoped, tag = 'scoped memory for tpu_custom_call.1']
    %13 = vsyncpa [#allocation3], 0
    %s14 = scalar_lea.sflag [#allocation3], 1
    %15 = vsyncpa %s14, 0
    loop: start=0, step=1, limit=4
    $region2: #{tpu_custom_call.1} parent=1 // loop_pre_header
      _
    $region3: #{tpu_custom_call.1} parent=1 // loop_header
      %s17 = sphi 0, %s21
      %p18 = scmp.ge.s32.totalorder %s17, 4
      %s27 = sphi 0, %s29
      %s30 = sphi 0, %s27
      %s31 = sphi 0, %s30
      %s47 = sphi 0, %s31
      %s51 = sphi 0, %s51
      %s53 = sphi 0, %s51
      %s54 = sphi 0, %s53
      %s68 = sphi 0, %s54
      %s72 = sphi 0, %s72
      %s74 = sphi 0, %s72
      %s75 = sphi 0, %s74
      %s89 = sphi 0, %s75
      %s93 = sphi 0, %s93
      %s95 = sphi 0, %s93
      %s96 = sphi 0, %s95
      %s110 = sphi 0, %s96
      %s114 = sphi 0, %s114
      %s116 = sphi 0, %s114
      %s117 = sphi 0, %s116
      %s131 = sphi 0, %s117
      %s135 = sphi 0, %s135
      %s137 = sphi 0, %s135
      %s138 = sphi 0, %s137
      %s152 = sphi 0, %s138
      %s156 = sphi 0, %s156
      %s158 = sphi 0, %s156
      %s159 = sphi 0, %s158
      %s173 = sphi 0, %s159
      %s177 = sphi 0, %s177
      %s179 = sphi 0, %s177
      %s180 = sphi 0, %s179
      %s194 = sphi 0, %s180
      %s200 = sphi 0, %s202
      %s203 = sphi 0, %s200
      %s204 = sphi 0, %s203
      %s220 = sphi 0, %s204
    $region4: #{tpu_custom_call.1} parent=1 // loop_header_branch
      %20 = sbr.rel (%p18) target = $region8
    $region5: #{tpu_custom_call.1} parent=1 // loop_body
      %s22 = ssub.s32 %s17, 1
      %s23 = ssub.s32 %s17, 2
      %s24 = sadd.s32 %s17, 1
      %s25 = ssub.s32 %s17, %s24
      %p26 = scmp.eq.s32.totalorder %s25, 0
      %s28 = sadd.s32 %s27, 1
      %s29 = scalar_select %p26, %s27, %s28
      %p32 = pneg %p26
      %p33 = scmp.eq.s32.totalorder %s17, 1
      %p34 = por %p32, %p33
      %p35 = scmp.ne.s32.totalorder %s27, %s30
      %p36 = scmp.eq.s32.totalorder %s17, 0
      %p37 = por %p35, %p36
      %p38 = scmp.ne.s32.totalorder %s27, %s30
      %p39 = scmp.eq.s32.totalorder %s22, 1
      %p40 = por %p38, %p39
      %p41 = scmp.ne.s32.totalorder %s30, %s31
      %p42 = scmp.eq.s32.totalorder %s22, 0
      %p43 = por %p41, %p42
      %p44 = scmp.ne.s32.totalorder %s30, %s31
      %p45 = scmp.eq.s32.totalorder %s23, 1
      %p46 = por %p44, %p45
      %p48 = scmp.ne.s32.totalorder %s31, %s47
      %p49 = scmp.eq.s32.totalorder %s23, 0
      %p50 = por %p48, %p49
      %s52 = sadd.s32 %s51, 1
      %p55 = scmp.eq.s32.totalorder %s17, 1
      %p56 = scmp.ne.s32.totalorder %s51, %s53
      %p57 = scmp.eq.s32.totalorder %s17, 0
      %p58 = por %p56, %p57
      %p59 = scmp.ne.s32.totalorder %s51, %s53
      %p60 = scmp.eq.s32.totalorder %s22, 1
      %p61 = por %p59, %p60
      %p62 = scmp.ne.s32.totalorder %s53, %s54
      %p63 = scmp.eq.s32.totalorder %s22, 0
      %p64 = por %p62, %p63
      %p65 = scmp.ne.s32.totalorder %s53, %s54
      %p66 = scmp.eq.s32.totalorder %s23, 1
      %p67 = por %p65, %p66
      %p69 = scmp.ne.s32.totalorder %s54, %s68
      %p70 = scmp.eq.s32.totalorder %s23, 0
      %p71 = por %p69, %p70
      %s73 = sadd.s32 %s72, 1
      %p76 = scmp.eq.s32.totalorder %s17, 1
      %p77 = scmp.ne.s32.totalorder %s72, %s74
      %p78 = scmp.eq.s32.totalorder %s17, 0
      %p79 = por %p77, %p78
      %p80 = scmp.ne.s32.totalorder %s72, %s74
      %p81 = scmp.eq.s32.totalorder %s22, 1
      %p82 = por %p80, %p81
      %p83 = scmp.ne.s32.totalorder %s74, %s75
      %p84 = scmp.eq.s32.totalorder %s22, 0
      %p85 = por %p83, %p84
      %p86 = scmp.ne.s32.totalorder %s74, %s75
      %p87 = scmp.eq.s32.totalorder %s23, 1
      %p88 = por %p86, %p87
      %p90 = scmp.ne.s32.totalorder %s75, %s89
      %p91 = scmp.eq.s32.totalorder %s23, 0
      %p92 = por %p90, %p91
      %s94 = sadd.s32 %s93, 1
      %p97 = scmp.eq.s32.totalorder %s17, 1
      %p98 = scmp.ne.s32.totalorder %s93, %s95
      %p99 = scmp.eq.s32.totalorder %s17, 0
      %p100 = por %p98, %p99
      %p101 = scmp.ne.s32.totalorder %s93, %s95
      %p102 = scmp.eq.s32.totalorder %s22, 1
      %p103 = por %p101, %p102
      %p104 = scmp.ne.s32.totalorder %s95, %s96
      %p105 = scmp.eq.s32.totalorder %s22, 0
      %p106 = por %p104, %p105
      %p107 = scmp.ne.s32.totalorder %s95, %s96
      %p108 = scmp.eq.s32.totalorder %s23, 1
      %p109 = por %p107, %p108
      %p111 = scmp.ne.s32.totalorder %s96, %s110
      %p112 = scmp.eq.s32.totalorder %s23, 0
      %p113 = por %p111, %p112
      %s115 = sadd.s32 %s114, 1
      %p118 = scmp.eq.s32.totalorder %s17, 1
      %p119 = scmp.ne.s32.totalorder %s114, %s116
      %p120 = scmp.eq.s32.totalorder %s17, 0
      %p121 = por %p119, %p120
      %p122 = scmp.ne.s32.totalorder %s114, %s116
      %p123 = scmp.eq.s32.totalorder %s22, 1
      %p124 = por %p122, %p123
      %p125 = scmp.ne.s32.totalorder %s116, %s117
      %p126 = scmp.eq.s32.totalorder %s22, 0
      %p127 = por %p125, %p126
      %p128 = scmp.ne.s32.totalorder %s116, %s117
      %p129 = scmp.eq.s32.totalorder %s23, 1
      %p130 = por %p128, %p129
      %p132 = scmp.ne.s32.totalorder %s117, %s131
      %p133 = scmp.eq.s32.totalorder %s23, 0
      %p134 = por %p132, %p133
      %s136 = sadd.s32 %s135, 1
      %p139 = scmp.eq.s32.totalorder %s17, 1
      %p140 = scmp.ne.s32.totalorder %s135, %s137
      %p141 = scmp.eq.s32.totalorder %s17, 0
      %p142 = por %p140, %p141
      %p143 = scmp.ne.s32.totalorder %s135, %s137
      %p144 = scmp.eq.s32.totalorder %s22, 1
      %p145 = por %p143, %p144
      %p146 = scmp.ne.s32.totalorder %s137, %s138
      %p147 = scmp.eq.s32.totalorder %s22, 0
      %p148 = por %p146, %p147
      %p149 = scmp.ne.s32.totalorder %s137, %s138
      %p150 = scmp.eq.s32.totalorder %s23, 1
      %p151 = por %p149, %p150
      %p153 = scmp.ne.s32.totalorder %s138, %s152
      %p154 = scmp.eq.s32.totalorder %s23, 0
      %p155 = por %p153, %p154
      %s157 = sadd.s32 %s156, 1
      %p160 = scmp.eq.s32.totalorder %s17, 1
      %p161 = scmp.ne.s32.totalorder %s156, %s158
      %p162 = scmp.eq.s32.totalorder %s17, 0
      %p163 = por %p161, %p162
      %p164 = scmp.ne.s32.totalorder %s156, %s158
      %p165 = scmp.eq.s32.totalorder %s22, 1
      %p166 = por %p164, %p165
      %p167 = scmp.ne.s32.totalorder %s158, %s159
      %p168 = scmp.eq.s32.totalorder %s22, 0
      %p169 = por %p167, %p168
      %p170 = scmp.ne.s32.totalorder %s158, %s159
      %p171 = scmp.eq.s32.totalorder %s23, 1
      %p172 = por %p170, %p171
      %p174 = scmp.ne.s32.totalorder %s159, %s173
      %p175 = scmp.eq.s32.totalorder %s23, 0
      %p176 = por %p174, %p175
      %s178 = sadd.s32 %s177, 1
      %p181 = scmp.eq.s32.totalorder %s17, 1
      %p182 = scmp.ne.s32.totalorder %s177, %s179
      %p183 = scmp.eq.s32.totalorder %s17, 0
      %p184 = por %p182, %p183
      %p185 = scmp.ne.s32.totalorder %s177, %s179
      %p186 = scmp.eq.s32.totalorder %s22, 1
      %p187 = por %p185, %p186
      %p188 = scmp.ne.s32.totalorder %s179, %s180
      %p189 = scmp.eq.s32.totalorder %s22, 0
      %p190 = por %p188, %p189
      %p191 = scmp.ne.s32.totalorder %s179, %s180
      %p192 = scmp.eq.s32.totalorder %s23, 1
      %p193 = por %p191, %p192
      %p195 = scmp.ne.s32.totalorder %s180, %s194
      %p196 = scmp.eq.s32.totalorder %s23, 0
      %p197 = por %p195, %p196
      %s198 = ssub.s32 %s17, %s24
      %p199 = scmp.eq.s32.totalorder %s198, 0
      %s201 = sadd.s32 %s200, 1
      %s202 = scalar_select %p199, %s200, %s201
      %p205 = pneg %p199
      %p206 = scmp.eq.s32.totalorder %s17, 1
      %p207 = por %p205, %p206
      %p208 = scmp.ne.s32.totalorder %s200, %s203
      %p209 = scmp.eq.s32.totalorder %s17, 0
      %p210 = por %p208, %p209
      %p211 = scmp.ne.s32.totalorder %s200, %s203
      %p212 = scmp.eq.s32.totalorder %s22, 1
      %p213 = por %p211, %p212
      %p214 = scmp.ne.s32.totalorder %s203, %s204
      %p215 = scmp.eq.s32.totalorder %s22, 0
      %p216 = por %p214, %p215
      %p217 = scmp.ne.s32.totalorder %s203, %s204
      %p218 = scmp.eq.s32.totalorder %s23, 1
      %p219 = por %p217, %p218
      %p221 = scmp.ne.s32.totalorder %s204, %s220
      %p222 = scmp.eq.s32.totalorder %s23, 0
      %p223 = por %p221, %p222
      %p224 = scmp.le.s32.totalorder 1, %s17
      %p225 = scmp.lt.s32.totalorder %s17, 3
      %p226 = pnand %p224, %p225
      %p227 = pneg %p226
      // Predicated region
      $region9: #{tpu_custom_call.1} parent=5 // pred_check
        _
      $region10: #{tpu_custom_call.1} parent=5 // pred_check_branch
        %229 = sbr.rel (%p226) target = $region12
      $region11: #{tpu_custom_call.1} parent=5 // pred_region
        %s230 = ssub.s32 %s17, 1
        // Predicated region
        $region13: #{tpu_custom_call.1} parent=11 // pred_check
          %p231 = pneg %p64
        $region14: #{tpu_custom_call.1} parent=11 // pred_check_branch
          %233 = sbr.rel (%p231) target = $region16
        $region15: #{tpu_custom_call.1} parent=11 // pred_region
          _
        $region16: #{tpu_custom_call.1} parent=11 // pred_fallthru
          _
        // Predicated region
        $region17: #{tpu_custom_call.1} parent=11 // pred_check
          %p234 = pneg %p85
        $region18: #{tpu_custom_call.1} parent=11 // pred_check_branch
          %236 = sbr.rel (%p234) target = $region20
        $region19: #{tpu_custom_call.1} parent=11 // pred_region
          _
        $region20: #{tpu_custom_call.1} parent=11 // pred_fallthru
          _
        // Predicated region
        $region21: #{tpu_custom_call.1} parent=11 // pred_check
          %p237 = pneg %p106
        $region22: #{tpu_custom_call.1} parent=11 // pred_check_branch
          %239 = sbr.rel (%p237) target = $region24
        $region23: #{tpu_custom_call.1} parent=11 // pred_region
          _
        $region24: #{tpu_custom_call.1} parent=11 // pred_fallthru
          _
        // Predicated region
        $region25: #{tpu_custom_call.1} parent=11 // pred_check
          %p240 = pneg %p127
        $region26: #{tpu_custom_call.1} parent=11 // pred_check_branch
          %242 = sbr.rel (%p240) target = $region28
        $region27: #{tpu_custom_call.1} parent=11 // pred_region
          _
        $region28: #{tpu_custom_call.1} parent=11 // pred_fallthru
          _
        // Predicated region
        $region29: #{tpu_custom_call.1} parent=11 // pred_check
          %p243 = pneg %p148
        $region30: #{tpu_custom_call.1} parent=11 // pred_check_branch
          %245 = sbr.rel (%p243) target = $region32
        $region31: #{tpu_custom_call.1} parent=11 // pred_region
          _
        $region32: #{tpu_custom_call.1} parent=11 // pred_fallthru
          _
        // Predicated region
        $region33: #{tpu_custom_call.1} parent=11 // pred_check
          %p246 = pneg %p169
        $region34: #{tpu_custom_call.1} parent=11 // pred_check_branch
          %248 = sbr.rel (%p246) target = $region36
        $region35: #{tpu_custom_call.1} parent=11 // pred_region
          _
        $region36: #{tpu_custom_call.1} parent=11 // pred_fallthru
          _
        // Predicated region
        $region37: #{tpu_custom_call.1} parent=11 // pred_check
          %p249 = pneg %p190
        $region38: #{tpu_custom_call.1} parent=11 // pred_check_branch
          %251 = sbr.rel (%p249) target = $region40
        $region39: #{tpu_custom_call.1} parent=11 // pred_region
          _
        $region40: #{tpu_custom_call.1} parent=11 // pred_fallthru
          _
      $region12: #{tpu_custom_call.1} parent=5 // pred_fallthru
        _
      %p252 = scmp.lt.s32.totalorder %s17, 2
      // Predicated region
      $region41: #{tpu_custom_call.1} parent=5 // pred_check
        %p253 = pneg %p252
      $region42: #{tpu_custom_call.1} parent=5 // pred_check_branch
        %255 = sbr.rel (%p253) target = $region44
      $region43: #{tpu_custom_call.1} parent=5 // pred_region
        // Predicated region
        $region45: #{tpu_custom_call.1} parent=43 // pred_check
          %p256 = pneg %p37
        $region46: #{tpu_custom_call.1} parent=43 // pred_check_branch
          %258 = sbr.rel (%p256) target = $region48
        $region47: #{tpu_custom_call.1} parent=43 // pred_region
          %p259 = scmp.lt.s32.totalorder %s17, 1
          %s260 = scalar_select %p259, %s17, 1
          %s261 = smul.addr %s260, 4
          %s262 = scalar_lea.vmem %s0, %s261
        $region48: #{tpu_custom_call.1} parent=43 // pred_fallthru
          _
      $region44: #{tpu_custom_call.1} parent=5 // pred_fallthru
        _
      %p263 = scmp.le.s32.totalorder 1, %s17
      %p264 = scmp.lt.s32.totalorder %s17, 3
      %p265 = pnand %p263, %p264
      %p266 = pneg %p265
      // Predicated region
      $region49: #{tpu_custom_call.1} parent=5 // pred_check
        _
      $region50: #{tpu_custom_call.1} parent=5 // pred_check_branch
        %268 = sbr.rel (%p265) target = $region52
      $region51: #{tpu_custom_call.1} parent=5 // pred_region
        %s269 = ssub.s32 %s17, 1
        %p270 = scmp.lt.s32.totalorder %s22, 1
        %s271 = scalar_select %p270, %s22, 1
        %s272 = smul.addr %s271, 4
        %s273 = scalar_lea.vmem %s0, %s272
        %p274 = pneg %p43
        %p275 = pneg %p40
        %p276 = pneg %p64
        %p277 = pneg %p61
        %p278 = pneg %p85
        %p279 = pneg %p82
        %p280 = pneg %p106
        %p281 = pneg %p103
        %p282 = pneg %p127
        %p283 = pneg %p124
        %p284 = pneg %p148
        %p285 = pneg %p145
        %p286 = pneg %p169
        %p287 = pneg %p166
        %p288 = pneg %p190
        %p289 = pneg %p187
        %p290 = pneg %p216
        %p291 = pneg %p213
        %s292 = sand.u32 %s203, 1
        %s293 = scalar_lea.sflag [#allocation3], %s292
        %s294 = sand.u32 %s203, 1
        %s295 = smul.addr %s294, 4
        %s296 = scalar_lea.vmem [#allocation2], %s295
        %p297 = scmp.lt.s32.totalorder %s22, 1
        %s298 = scalar_select %p297, %s22, 1
        %s299 = smul.addr %s298, 4
        %s300 = scalar_lea.vmem %s0, %s299
        %v302 = vld [vmem:[%s300] sm:$0xf]
        %v303 = vunpack.c.l.bf16 %v302
        %v304 = vmul.f32 %v303, %v303
        %vm305 = vcmask 261120
        %v306 = vsel %vm305, %v304, 0.0
        %307 = vadd.xlane.f32.xlu0 %v306
        %v308 = vpop.xlane.xlu0 %307
        %v309 = vrsqrt.pop %v308
        %v310 = vmul.f32 %v308, %v309
        %vm311 = vcmp.eq.f32.partialorder %v308, inf
        %v312 = vsel %vm311, %v308, %v310
        %vm313 = vcmp.eq.f32.partialorder %v308, 0.0
        %v314 = vand.u32 %v308, 2147483648
        %v315 = vsel %vm313, %v314, %v312
        %v316 = vld [vmem:[%s1] sm:$0x1]
        %v317 = vrcp.pop 5.656854
        %v318 = vmul.f32 %v315, %v317
        %v319 = vadd.f32 %v318, 1e-05
        %v321 = vlaneseq
        %v322 = vshrl.u32 %v321, 7
        %v323 = vsub.s32 0, %v322
        %v324 = vrot.slane %v316, %v323
        %v326 = vrcp.pop %v319
        %v327 = vmul.f32 %v324, %v326
        %v328 = vmul.f32 %v303, %v327
        %v329 = vpack.c.bf16 %v328, %v328
        %v330 = vld [vmem:[%s2] sm:$0xf]
        %v331 = vld [vmem:[%s2 + $0x4] sm:$0xf]
        %v332 = vld [vmem:[%s2 + $0x8] sm:$0xf]
        %v333 = vld [vmem:[%s2 + $0xc] sm:$0xf]
        %v338 = vunpack.c.l.b16 %v330
        %v339 = vunpack.c.l.b16 %v331
        %v340 = vunpack.c.l.b16 %v332
        %v341 = vunpack.c.l.b16 %v333
        %v342 = vpack.c.b16 %v339, %v338
        %v343 = vpack.c.b16 %v341, %v340
        %v347 = vsel %vm305, %v329, 0
        %349 = vmatprep.subr.bf16.mxu0 0
        %350 = vmatpush1.bf16.msra.mxu0 %v342
        %351 = vmatprep.subr.bf16.mxu0 0
        %352 = vmatpush1.bf16.msra.mxu0 %v343
        %353 = vmatprep.subr.bf16.mxu0 0
        %354 = vmatpush1.bf16.msra.mxu0 0
        %355 = vmatprep.subr.bf16.mxu0 0
        %356 = vmatpush1.bf16.msra.mxu0 0
        %357 = vmatprep.subr.bf16.mxu0 0
        %358 = vmatpush1.bf16.msra.mxu0 0
        %359 = vmatprep.subr.bf16.mxu0 0
        %360 = vmatpush1.bf16.msra.mxu0 0
        %361 = vmatprep.subr.bf16.mxu0 0
        %362 = vmatpush1.bf16.msra.mxu0 0
        %363 = vmatprep.subr.bf16.mxu0 0
        %364 = vmatpush1.bf16.msra.mxu0 0
        %365 = vmatprep.subr.bf16.mxu0 0
        %366 = vmatpush1.bf16.msra.mxu0 0
        %367 = vmatprep.subr.bf16.mxu0 0
        %368 = vmatpush1.bf16.msra.mxu0 0
        %369 = vmatprep.subr.bf16.mxu0 0
        %370 = vmatpush1.bf16.msra.mxu0 0
        %371 = vmatprep.subr.bf16.mxu0 0
        %372 = vmatpush1.bf16.msra.mxu0 0
        %373 = vmatprep.subr.bf16.mxu0 0
        %374 = vmatpush1.bf16.msra.mxu0 0
        %375 = vmatprep.subr.bf16.mxu0 0
        %376 = vmatpush1.bf16.msra.mxu0 0
        %377 = vmatprep.subr.bf16.mxu0 0
        %378 = vmatpush1.bf16.msra.mxu0 0
        %379 = vmatprep.subr.bf16.mxu0 0
        %380 = vmatpush1.bf16.msra.mxu0 0
        %381 = vmatprep.mubr.bf16.mxu0 0
        %382 = vmatmul.mubr.bf16.gmra.mrb[0].mxu0 %v347
        %v383 = vpop.f32.mrb[0].mxu0
        %v384 = vadd.f32 0.0, %v383
        %v385 = vpop.f32.mrb[0].mxu0
        %v386 = vpop.f32.mrb[0].mxu0
        %v387 = vpop.f32.mrb[0].mxu0
        %388 = vdwg.mxu0
        %v389 = vld [vmem:[%s3] sm:$0xf]
        %v390 = vld [vmem:[%s3 + $0x4] sm:$0xf]
        %v391 = vld [vmem:[%s3 + $0x8] sm:$0xf]
        %v392 = vld [vmem:[%s3 + $0xc] sm:$0xf]
        %v397 = vunpack.c.l.b16 %v389
        %v398 = vunpack.c.l.b16 %v390
        %v399 = vunpack.c.l.b16 %v391
        %v400 = vunpack.c.l.b16 %v392
        %v401 = vpack.c.b16 %v398, %v397
        %v402 = vpack.c.b16 %v400, %v399
        %405 = vmatprep.subr.bf16.mxu0 0
        %406 = vmatpush1.bf16.msra.mxu0 %v401
        %407 = vmatprep.subr.bf16.mxu0 0
        %408 = vmatpush1.bf16.msra.mxu0 %v402
        %409 = vmatprep.subr.bf16.mxu0 0
        %410 = vmatpush1.bf16.msra.mxu0 0
        %411 = vmatprep.subr.bf16.mxu0 0
        %412 = vmatpush1.bf16.msra.mxu0 0
        %413 = vmatprep.subr.bf16.mxu0 0
        %414 = vmatpush1.bf16.msra.mxu0 0
        %415 = vmatprep.subr.bf16.mxu0 0
        %416 = vmatpush1.bf16.msra.mxu0 0
        %417 = vmatprep.subr.bf16.mxu0 0
        %418 = vmatpush1.bf16.msra.mxu0 0
        %419 = vmatprep.subr.bf16.mxu0 0
        %420 = vmatpush1.bf16.msra.mxu0 0
        %421 = vmatprep.subr.bf16.mxu0 0
        %422 = vmatpush1.bf16.msra.mxu0 0
        %423 = vmatprep.subr.bf16.mxu0 0
        %424 = vmatpush1.bf16.msra.mxu0 0
        %425 = vmatprep.subr.bf16.mxu0 0
        %426 = vmatpush1.bf16.msra.mxu0 0
        %427 = vmatprep.subr.bf16.mxu0 0
        %428 = vmatpush1.bf16.msra.mxu0 0
        %429 = vmatprep.subr.bf16.mxu0 0
        %430 = vmatpush1.bf16.msra.mxu0 0
        %431 = vmatprep.subr.bf16.mxu0 0
        %432 = vmatpush1.bf16.msra.mxu0 0
        %433 = vmatprep.subr.bf16.mxu0 0
        %434 = vmatpush1.bf16.msra.mxu0 0
        %435 = vmatprep.subr.bf16.mxu0 0
        %436 = vmatpush1.bf16.msra.mxu0 0
        %437 = vmatprep.mubr.bf16.mxu0 0
        %438 = vmatmul.mubr.bf16.gmra.mrb[0].mxu0 %v347
        %v439 = vpop.f32.mrb[0].mxu0
        %v440 = vadd.f32 0.0, %v439
        %v441 = vpop.f32.mrb[0].mxu0
        %v442 = vpop.f32.mrb[0].mxu0
        %v443 = vpop.f32.mrb[0].mxu0
        %444 = vdwg.mxu0
        %v445 = vld [vmem:[%s4] sm:$0xf]
        %v446 = vld [vmem:[%s4 + $0x4] sm:$0xf]
        %v447 = vld [vmem:[%s4 + $0x8] sm:$0xf]
        %v448 = vld [vmem:[%s4 + $0xc] sm:$0xf]
        %v453 = vunpack.c.l.b16 %v445
        %v454 = vunpack.c.l.b16 %v446
        %v455 = vunpack.c.l.b16 %v447
        %v456 = vunpack.c.l.b16 %v448
        %v457 = vpack.c.b16 %v454, %v453
        %v458 = vpack.c.b16 %v456, %v455
        %461 = vmatprep.subr.bf16.mxu0 0
        %462 = vmatpush1.bf16.msra.mxu0 %v457
        %463 = vmatprep.subr.bf16.mxu0 0
        %464 = vmatpush1.bf16.msra.mxu0 %v458
        %465 = vmatprep.subr.bf16.mxu0 0
        %466 = vmatpush1.bf16.msra.mxu0 0
        %467 = vmatprep.subr.bf16.mxu0 0
        %468 = vmatpush1.bf16.msra.mxu0 0
        %469 = vmatprep.subr.bf16.mxu0 0
        %470 = vmatpush1.bf16.msra.mxu0 0
        %471 = vmatprep.subr.bf16.mxu0 0
        %472 = vmatpush1.bf16.msra.mxu0 0
        %473 = vmatprep.subr.bf16.mxu0 0
        %474 = vmatpush1.bf16.msra.mxu0 0
        %475 = vmatprep.subr.bf16.mxu0 0
        %476 = vmatpush1.bf16.msra.mxu0 0
        %477 = vmatprep.subr.bf16.mxu0 0
        %478 = vmatpush1.bf16.msra.mxu0 0
        %479 = vmatprep.subr.bf16.mxu0 0
        %480 = vmatpush1.bf16.msra.mxu0 0
        %481 = vmatprep.subr.bf16.mxu0 0
        %482 = vmatpush1.bf16.msra.mxu0 0
        %483 = vmatprep.subr.bf16.mxu0 0
        %484 = vmatpush1.bf16.msra.mxu0 0
        %485 = vmatprep.subr.bf16.mxu0 0
        %486 = vmatpush1.bf16.msra.mxu0 0
        %487 = vmatprep.subr.bf16.mxu0 0
        %488 = vmatpush1.bf16.msra.mxu0 0
        %489 = vmatprep.subr.bf16.mxu0 0
        %490 = vmatpush1.bf16.msra.mxu0 0
        %491 = vmatprep.subr.bf16.mxu0 0
        %492 = vmatpush1.bf16.msra.mxu0 0
        %493 = vmatprep.mubr.bf16.mxu0 0
        %494 = vmatmul.mubr.bf16.gmra.mrb[0].mxu0 %v347
        %v495 = vpop.f32.mrb[0].mxu0
        %v496 = vadd.f32 0.0, %v495
        %v497 = vpop.f32.mrb[0].mxu0
        %v498 = vpop.f32.mrb[0].mxu0
        %v499 = vpop.f32.mrb[0].mxu0
        %500 = vdwg.mxu0
        %v501 = vld [vmem:[%s6] sm:$0xff]
        %v503 = vcombine.high %v501, %v501
        %v505 = vunpack.c.l.s4 1966171168
        %v506 = vunpack.c.0.s8 %v505
        %v507 = vlaneseq
        %v508 = vshrl.u32 %v507, 7
        %v509 = vsub.s32 %v506, %v508
        %v510 = vrot.slane %v501, %v509
        %v512 = vunpack.c.l.s4 1966171168
        %v513 = vunpack.c.0.s8 %v512
        %v514 = vlaneseq
        %v515 = vshrl.u32 %v514, 7
        %v516 = vsub.s32 %v513, %v515
        %v517 = vrot.slane %v503, %v516
        %v518 = vcombine.high %v510, %v510
        %v519 = vcombine.high %v517, %v517
        %v521 = vunpack.c.l.s4 1966171168
        %v522 = vunpack.c.0.s8 %v521
        %v523 = vlaneseq
        %v524 = vshrl.u32 %v523, 7
        %v525 = vsub.s32 %v522, %v524
        %v526 = vrot.slane %v510, %v525
        %v528 = vunpack.c.l.s4 1966171168
        %v529 = vunpack.c.0.s8 %v528
        %v530 = vlaneseq
        %v531 = vshrl.u32 %v530, 7
        %v532 = vsub.s32 %v529, %v531
        %v533 = vrot.slane %v517, %v532
        %v535 = vunpack.c.l.s4 1966171168
        %v536 = vunpack.c.0.s8 %v535
        %v537 = vlaneseq
        %v538 = vshrl.u32 %v537, 7
        %v539 = vsub.s32 %v536, %v538
        %v540 = vrot.slane %v518, %v539
        %v542 = vunpack.c.l.s4 1966171168
        %v543 = vunpack.c.0.s8 %v542
        %v544 = vlaneseq
        %v545 = vshrl.u32 %v544, 7
        %v546 = vsub.s32 %v543, %v545
        %v547 = vrot.slane %v519, %v546
        %v548 = vcombine.high %v526, %v526
        %v549 = vcombine.high %v533, %v533
        %v550 = vcombine.high %v540, %v540
        %v551 = vcombine.high %v547, %v547
        %v552 = vld [vmem:[%s7] sm:$0xff]
        %v554 = vcombine.high %v552, %v552
        %v556 = vunpack.c.l.s4 1966171168
        %v557 = vunpack.c.0.s8 %v556
        %v558 = vlaneseq
        %v559 = vshrl.u32 %v558, 7
        %v560 = vsub.s32 %v557, %v559
        %v561 = vrot.slane %v552, %v560
        %v563 = vunpack.c.l.s4 1966171168
        %v564 = vunpack.c.0.s8 %v563
        %v565 = vlaneseq
        %v566 = vshrl.u32 %v565, 7
        %v567 = vsub.s32 %v564, %v566
        %v568 = vrot.slane %v554, %v567
        %v569 = vcombine.high %v561, %v561
        %v570 = vcombine.high %v568, %v568
        %v572 = vunpack.c.l.s4 1966171168
        %v573 = vunpack.c.0.s8 %v572
        %v574 = vlaneseq
        %v575 = vshrl.u32 %v574, 7
        %v576 = vsub.s32 %v573, %v575
        %v577 = vrot.slane %v561, %v576
        %v579 = vunpack.c.l.s4 1966171168
        %v580 = vunpack.c.0.s8 %v579
        %v581 = vlaneseq
        %v582 = vshrl.u32 %v581, 7
        %v583 = vsub.s32 %v580, %v582
        %v584 = vrot.slane %v568, %v583
        %v586 = vunpack.c.l.s4 1966171168
        %v587 = vunpack.c.0.s8 %v586
        %v588 = vlaneseq
        %v589 = vshrl.u32 %v588, 7
        %v590 = vsub.s32 %v587, %v589
        %v591 = vrot.slane %v569, %v590
        %v593 = vunpack.c.l.s4 1966171168
        %v594 = vunpack.c.0.s8 %v593
        %v595 = vlaneseq
        %v596 = vshrl.u32 %v595, 7
        %v597 = vsub.s32 %v594, %v596
        %v598 = vrot.slane %v570, %v597
        %v599 = vcombine.high %v577, %v577
        %v600 = vcombine.high %v584, %v584
        %v601 = vcombine.high %v591, %v591
        %v602 = vcombine.high %v598, %v598
        %604 = vrot.lane.b32.xlu0 %v384, 120
        %v605 = vpop.permute.xlu0 %604
        %607 = vrot.lane.b32.xlu0 %v384, 112
        %v608 = vpop.permute.xlu0 %607
        %610 = vrot.lane.b32.xlu0 %v384, 104
        %v611 = vpop.permute.xlu0 %610
        %v613 = vcombine.low %v384, %v608
        %v614 = vcombine.high %v384, %v608
        %v616 = vunpack.c.l.s4 1983009808
        %v617 = vunpack.c.0.s8 %v616
        %v618 = vlaneseq
        %v619 = vshrl.u32 %v618, 7
        %v620 = vsub.s32 %v617, %v619
        %v621 = vrot.slane %v613, %v620
        %v623 = vunpack.c.l.s4 1983009808
        %v624 = vunpack.c.0.s8 %v623
        %v625 = vlaneseq
        %v626 = vshrl.u32 %v625, 7
        %v627 = vsub.s32 %v624, %v626
        %v628 = vrot.slane %v614, %v627
        %v629 = vcombine.low %v605, %v611
        %v630 = vcombine.high %v605, %v611
        %v632 = vunpack.c.l.s4 1983009808
        %v633 = vunpack.c.0.s8 %v632
        %v634 = vlaneseq
        %v635 = vshrl.u32 %v634, 7
        %v636 = vsub.s32 %v633, %v635
        %v637 = vrot.slane %v629, %v636
        %v639 = vunpack.c.l.s4 1983009808
        %v640 = vunpack.c.0.s8 %v639
        %v641 = vlaneseq
        %v642 = vshrl.u32 %v641, 7
        %v643 = vsub.s32 %v640, %v642
        %v644 = vrot.slane %v630, %v643
        %v645 = vcombine.low %v621, %v637
        %v646 = vcombine.high %v621, %v637
        %v648 = vunpack.c.l.s4 1934713408
        %v649 = vunpack.c.0.s8 %v648
        %v650 = vlaneseq
        %v651 = vshrl.u32 %v650, 7
        %v652 = vsub.s32 %v649, %v651
        %v653 = vrot.slane %v645, %v652
        %v655 = vunpack.c.l.s4 1934713408
        %v656 = vunpack.c.0.s8 %v655
        %v657 = vlaneseq
        %v658 = vshrl.u32 %v657, 7
        %v659 = vsub.s32 %v656, %v658
        %v660 = vrot.slane %v646, %v659
        %v661 = vcombine.low %v628, %v644
        %v662 = vcombine.high %v628, %v644
        %v664 = vunpack.c.l.s4 1934713408
        %v665 = vunpack.c.0.s8 %v664
        %v666 = vlaneseq
        %v667 = vshrl.u32 %v666, 7
        %v668 = vsub.s32 %v665, %v667
        %v669 = vrot.slane %v661, %v668
        %v671 = vunpack.c.l.s4 1934713408
        %v672 = vunpack.c.0.s8 %v671
        %v673 = vlaneseq
        %v674 = vshrl.u32 %v673, 7
        %v675 = vsub.s32 %v672, %v674
        %v676 = vrot.slane %v662, %v675
        %v677 = vcombine.high %v653, 0.0
        %v678 = vcombine.high %v660, 0.0
        %v679 = vcombine.high %v669, 0.0
        %v680 = vcombine.high %v676, 0.0
        %v681 = vmul.f32 %v653, 0.35355338
        %v682 = vmul.f32 %v677, 0.35355338
        %v683 = vmul.f32 %v660, 0.35355338
        %v684 = vmul.f32 %v678, 0.35355338
        %v685 = vmul.f32 %v669, 0.35355338
        %v686 = vmul.f32 %v679, 0.35355338
        %v687 = vmul.f32 %v676, 0.35355338
        %v688 = vmul.f32 %v680, 0.35355338
        %690 = vrot.lane.b32.xlu0 %v440, 120
        %v691 = vpop.permute.xlu0 %690
        %v693 = vcombine.high %v440, 0.0
        %v695 = vunpack.c.l.s4 1983009808
        %v696 = vunpack.c.0.s8 %v695
        %v697 = vlaneseq
        %v698 = vshrl.u32 %v697, 7
        %v699 = vsub.s32 %v696, %v698
        %v700 = vrot.slane %v440, %v699
        %v702 = vunpack.c.l.s4 1983009808
        %v703 = vunpack.c.0.s8 %v702
        %v704 = vlaneseq
        %v705 = vshrl.u32 %v704, 7
        %v706 = vsub.s32 %v703, %v705
        %v707 = vrot.slane %v693, %v706
        %v708 = vcombine.high %v691, 0.0
        %v710 = vunpack.c.l.s4 1983009808
        %v711 = vunpack.c.0.s8 %v710
        %v712 = vlaneseq
        %v713 = vshrl.u32 %v712, 7
        %v714 = vsub.s32 %v711, %v713
        %v715 = vrot.slane %v691, %v714
        %v717 = vunpack.c.l.s4 1983009808
        %v718 = vunpack.c.0.s8 %v717
        %v719 = vlaneseq
        %v720 = vshrl.u32 %v719, 7
        %v721 = vsub.s32 %v718, %v720
        %v722 = vrot.slane %v708, %v721
        %v723 = vcombine.low %v700, %v715
        %v724 = vcombine.high %v700, %v715
        %v726 = vunpack.c.l.s4 1934713408
        %v727 = vunpack.c.0.s8 %v726
        %v728 = vlaneseq
        %v729 = vshrl.u32 %v728, 7
        %v730 = vsub.s32 %v727, %v729
        %v731 = vrot.slane %v723, %v730
        %v733 = vunpack.c.l.s4 1934713408
        %v734 = vunpack.c.0.s8 %v733
        %v735 = vlaneseq
        %v736 = vshrl.u32 %v735, 7
        %v737 = vsub.s32 %v734, %v736
        %v738 = vrot.slane %v724, %v737
        %v739 = vcombine.low %v707, %v722
        %v740 = vcombine.high %v707, %v722
        %v742 = vunpack.c.l.s4 1934713408
        %v743 = vunpack.c.0.s8 %v742
        %v744 = vlaneseq
        %v745 = vshrl.u32 %v744, 7
        %v746 = vsub.s32 %v743, %v745
        %v747 = vrot.slane %v739, %v746
        %v749 = vunpack.c.l.s4 1934713408
        %v750 = vunpack.c.0.s8 %v749
        %v751 = vlaneseq
        %v752 = vshrl.u32 %v751, 7
        %v753 = vsub.s32 %v750, %v752
        %v754 = vrot.slane %v740, %v753
        %v755 = vcombine.high %v731, 0.0
        %v756 = vcombine.high %v738, 0.0
        %v757 = vcombine.high %v747, 0.0
        %v758 = vcombine.high %v754, 0.0
        %760 = vrot.lane.b32.xlu0 %v496, 120
        %v761 = vpop.permute.xlu0 %760
        %v763 = vcombine.high %v496, 0.0
        %v765 = vunpack.c.l.s4 1983009808
        %v766 = vunpack.c.0.s8 %v765
        %v767 = vlaneseq
        %v768 = vshrl.u32 %v767, 7
        %v769 = vsub.s32 %v766, %v768
        %v770 = vrot.slane %v496, %v769
        %v772 = vunpack.c.l.s4 1983009808
        %v773 = vunpack.c.0.s8 %v772
        %v774 = vlaneseq
        %v775 = vshrl.u32 %v774, 7
        %v776 = vsub.s32 %v773, %v775
        %v777 = vrot.slane %v763, %v776
        %v778 = vcombine.high %v761, 0.0
        %v780 = vunpack.c.l.s4 1983009808
        %v781 = vunpack.c.0.s8 %v780
        %v782 = vlaneseq
        %v783 = vshrl.u32 %v782, 7
        %v784 = vsub.s32 %v781, %v783
        %v785 = vrot.slane %v761, %v784
        %v787 = vunpack.c.l.s4 1983009808
        %v788 = vunpack.c.0.s8 %v787
        %v789 = vlaneseq
        %v790 = vshrl.u32 %v789, 7
        %v791 = vsub.s32 %v788, %v790
        %v792 = vrot.slane %v778, %v791
        %v793 = vcombine.low %v770, %v785
        %v794 = vcombine.high %v770, %v785
        %v796 = vunpack.c.l.s4 1934713408
        %v797 = vunpack.c.0.s8 %v796
        %v798 = vlaneseq
        %v799 = vshrl.u32 %v798, 7
        %v800 = vsub.s32 %v797, %v799
        %v801 = vrot.slane %v793, %v800
        %v803 = vunpack.c.l.s4 1934713408
        %v804 = vunpack.c.0.s8 %v803
        %v805 = vlaneseq
        %v806 = vshrl.u32 %v805, 7
        %v807 = vsub.s32 %v804, %v806
        %v808 = vrot.slane %v794, %v807
        %v809 = vcombine.low %v777, %v792
        %v810 = vcombine.high %v777, %v792
        %v812 = vunpack.c.l.s4 1934713408
        %v813 = vunpack.c.0.s8 %v812
        %v814 = vlaneseq
        %v815 = vshrl.u32 %v814, 7
        %v816 = vsub.s32 %v813, %v815
        %v817 = vrot.slane %v809, %v816
        %v819 = vunpack.c.l.s4 1934713408
        %v820 = vunpack.c.0.s8 %v819
        %v821 = vlaneseq
        %v822 = vshrl.u32 %v821, 7
        %v823 = vsub.s32 %v820, %v822
        %v824 = vrot.slane %v810, %v823
        %v825 = vcombine.high %v801, 0.0
        %v826 = vcombine.high %v808, 0.0
        %v827 = vcombine.high %v817, 0.0
        %v828 = vcombine.high %v824, 0.0
        %v829 = vsub.f32 0.0, %v681
        %v830 = vsub.f32 0.0, %v682
        %v831 = vsub.f32 0.0, %v683
        %v832 = vsub.f32 0.0, %v684
        %v833 = vsub.f32 0.0, %v685
        %v834 = vsub.f32 0.0, %v686
        %v835 = vsub.f32 0.0, %v687
        %v836 = vsub.f32 0.0, %v688
        %845 = vrot.lane.b32.xlu0 %v829, 124
        %v846 = vpop.permute.xlu0 %845
        %847 = vrot.lane.b32.xlu0 %v830, 124
        %v848 = vpop.permute.xlu0 %847
        %849 = vrot.lane.b32.xlu0 %v831, 124
        %v850 = vpop.permute.xlu0 %849
        %851 = vrot.lane.b32.xlu0 %v832, 124
        %v852 = vpop.permute.xlu0 %851
        %853 = vrot.lane.b32.xlu0 %v833, 124
        %v854 = vpop.permute.xlu0 %853
        %855 = vrot.lane.b32.xlu0 %v834, 124
        %v856 = vpop.permute.xlu0 %855
        %857 = vrot.lane.b32.xlu0 %v835, 124
        %v858 = vpop.permute.xlu0 %857
        %859 = vrot.lane.b32.xlu0 %v836, 124
        %v860 = vpop.permute.xlu0 %859
        %877 = vrot.lane.b32.xlu0 %v681, 4
        %v878 = vpop.permute.xlu0 %877
        %879 = vrot.lane.b32.xlu0 %v682, 4
        %v880 = vpop.permute.xlu0 %879
        %881 = vrot.lane.b32.xlu0 %v683, 4
        %v882 = vpop.permute.xlu0 %881
        %883 = vrot.lane.b32.xlu0 %v684, 4
        %v884 = vpop.permute.xlu0 %883
        %885 = vrot.lane.b32.xlu0 %v685, 4
        %v886 = vpop.permute.xlu0 %885
        %887 = vrot.lane.b32.xlu0 %v686, 4
        %v888 = vpop.permute.xlu0 %887
        %889 = vrot.lane.b32.xlu0 %v687, 4
        %v890 = vpop.permute.xlu0 %889
        %891 = vrot.lane.b32.xlu0 %v688, 4
        %v892 = vpop.permute.xlu0 %891
        %vm901 = vcmask 31744
        %v902 = vsel %vm901, %v846, %v878
        %v903 = vsel %vm901, %v848, %v880
        %v904 = vsel %vm901, %v850, %v882
        %v905 = vsel %vm901, %v852, %v884
        %v906 = vsel %vm901, %v854, %v886
        %v907 = vsel %vm901, %v856, %v888
        %v908 = vsel %vm901, %v858, %v890
        %v909 = vsel %vm901, %v860, %v892
        %v910 = vlaneseq
        %v911 = vshrl.u32 %v910, 7
        %v912 = vsub.s32 0, %v911
        %v913 = vrot.slane %v526, %v912
        %v914 = vlaneseq
        %v915 = vshrl.u32 %v914, 7
        %v916 = vsub.s32 0, %v915
        %v917 = vrot.slane %v540, %v916
        %v918 = vlaneseq
        %v919 = vshrl.u32 %v918, 7
        %v920 = vsub.s32 0, %v919
        %v921 = vrot.slane %v548, %v920
        %v922 = vlaneseq
        %v923 = vshrl.u32 %v922, 7
        %v924 = vsub.s32 0, %v923
        %v925 = vrot.slane %v550, %v924
        %v926 = vlaneseq
        %v927 = vshrl.u32 %v926, 7
        %v928 = vsub.s32 0, %v927
        %v929 = vrot.slane %v533, %v928
        %v930 = vlaneseq
        %v931 = vshrl.u32 %v930, 7
        %v932 = vsub.s32 0, %v931
        %v933 = vrot.slane %v547, %v932
        %v934 = vlaneseq
        %v935 = vshrl.u32 %v934, 7
        %v936 = vsub.s32 0, %v935
        %v937 = vrot.slane %v549, %v936
        %v938 = vlaneseq
        %v939 = vshrl.u32 %v938, 7
        %v940 = vsub.s32 0, %v939
        %v941 = vrot.slane %v551, %v940
        %v950 = vmul.f32 %v681, %v913
        %v951 = vmul.f32 %v682, %v917
        %v952 = vmul.f32 %v683, %v921
        %v953 = vmul.f32 %v684, %v925
        %v954 = vmul.f32 %v685, %v929
        %v955 = vmul.f32 %v686, %v933
        %v956 = vmul.f32 %v687, %v937
        %v957 = vmul.f32 %v688, %v941
        %v958 = vlaneseq
        %v959 = vshrl.u32 %v958, 7
        %v960 = vsub.s32 0, %v959
        %v961 = vrot.slane %v577, %v960
        %v962 = vlaneseq
        %v963 = vshrl.u32 %v962, 7
        %v964 = vsub.s32 0, %v963
        %v965 = vrot.slane %v591, %v964
        %v966 = vlaneseq
        %v967 = vshrl.u32 %v966, 7
        %v968 = vsub.s32 0, %v967
        %v969 = vrot.slane %v599, %v968
        %v970 = vlaneseq
        %v971 = vshrl.u32 %v970, 7
        %v972 = vsub.s32 0, %v971
        %v973 = vrot.slane %v601, %v972
        %v974 = vlaneseq
        %v975 = vshrl.u32 %v974, 7
        %v976 = vsub.s32 0, %v975
        %v977 = vrot.slane %v584, %v976
        %v978 = vlaneseq
        %v979 = vshrl.u32 %v978, 7
        %v980 = vsub.s32 0, %v979
        %v981 = vrot.slane %v598, %v980
        %v982 = vlaneseq
        %v983 = vshrl.u32 %v982, 7
        %v984 = vsub.s32 0, %v983
        %v985 = vrot.slane %v600, %v984
        %v986 = vlaneseq
        %v987 = vshrl.u32 %v986, 7
        %v988 = vsub.s32 0, %v987
        %v989 = vrot.slane %v602, %v988
        %v998 = vmul.f32 %v902, %v961
        %v999 = vmul.f32 %v903, %v965
        %v1000 = vmul.f32 %v904, %v969
        %v1001 = vmul.f32 %v905, %v973
        %v1002 = vmul.f32 %v906, %v977
        %v1003 = vmul.f32 %v907, %v981
        %v1004 = vmul.f32 %v908, %v985
        %v1005 = vmul.f32 %v909, %v989
        %v1006 = vadd.f32 %v950, %v998
        %v1007 = vadd.f32 %v951, %v999
        %v1008 = vadd.f32 %v952, %v1000
        %v1009 = vadd.f32 %v953, %v1001
        %v1010 = vadd.f32 %v954, %v1002
        %v1011 = vadd.f32 %v955, %v1003
        %v1012 = vadd.f32 %v956, %v1004
        %v1013 = vadd.f32 %v957, %v1005
        %v1014 = vsub.f32 0.0, %v731
        %v1015 = vsub.f32 0.0, %v755
        %v1016 = vsub.f32 0.0, %v738
        %v1017 = vsub.f32 0.0, %v756
        %v1018 = vsub.f32 0.0, %v747
        %v1019 = vsub.f32 0.0, %v757
        %v1020 = vsub.f32 0.0, %v754
        %v1021 = vsub.f32 0.0, %v758
        %1030 = vrot.lane.b32.xlu0 %v1014, 124
        %v1031 = vpop.permute.xlu0 %1030
        %1032 = vrot.lane.b32.xlu0 %v1015, 124
        %v1033 = vpop.permute.xlu0 %1032
        %1034 = vrot.lane.b32.xlu0 %v1016, 124
        %v1035 = vpop.permute.xlu0 %1034
        %1036 = vrot.lane.b32.xlu0 %v1017, 124
        %v1037 = vpop.permute.xlu0 %1036
        %1038 = vrot.lane.b32.xlu0 %v1018, 124
        %v1039 = vpop.permute.xlu0 %1038
        %1040 = vrot.lane.b32.xlu0 %v1019, 124
        %v1041 = vpop.permute.xlu0 %1040
        %1042 = vrot.lane.b32.xlu0 %v1020, 124
        %v1043 = vpop.permute.xlu0 %1042
        %1044 = vrot.lane.b32.xlu0 %v1021, 124
        %v1045 = vpop.permute.xlu0 %1044
        %1062 = vrot.lane.b32.xlu0 %v731, 4
        %v1063 = vpop.permute.xlu0 %1062
        %1064 = vrot.lane.b32.xlu0 %v755, 4
        %v1065 = vpop.permute.xlu0 %1064
        %1066 = vrot.lane.b32.xlu0 %v738, 4
        %v1067 = vpop.permute.xlu0 %1066
        %1068 = vrot.lane.b32.xlu0 %v756, 4
        %v1069 = vpop.permute.xlu0 %1068
        %1070 = vrot.lane.b32.xlu0 %v747, 4
        %v1071 = vpop.permute.xlu0 %1070
        %1072 = vrot.lane.b32.xlu0 %v757, 4
        %v1073 = vpop.permute.xlu0 %1072
        %1074 = vrot.lane.b32.xlu0 %v754, 4
        %v1075 = vpop.permute.xlu0 %1074
        %1076 = vrot.lane.b32.xlu0 %v758, 4
        %v1077 = vpop.permute.xlu0 %1076
        %v1086 = vsel %vm901, %v1031, %v1063
        %v1087 = vsel %vm901, %v1033, %v1065
        %v1088 = vsel %vm901, %v1035, %v1067
        %v1089 = vsel %vm901, %v1037, %v1069
        %v1090 = vsel %vm901, %v1039, %v1071
        %v1091 = vsel %vm901, %v1041, %v1073
        %v1092 = vsel %vm901, %v1043, %v1075
        %v1093 = vsel %vm901, %v1045, %v1077
        %v1094 = vmul.f32 %v731, %v913
        %v1095 = vmul.f32 %v755, %v917
        %v1096 = vmul.f32 %v738, %v921
        %v1097 = vmul.f32 %v756, %v925
        %v1098 = vmul.f32 %v747, %v929
        %v1099 = vmul.f32 %v757, %v933
        %v1100 = vmul.f32 %v754, %v937
        %v1101 = vmul.f32 %v758, %v941
        %v1102 = vmul.f32 %v1086, %v961
        %v1103 = vmul.f32 %v1087, %v965
        %v1104 = vmul.f32 %v1088, %v969
        %v1105 = vmul.f32 %v1089, %v973
        %v1106 = vmul.f32 %v1090, %v977
        %v1107 = vmul.f32 %v1091, %v981
        %v1108 = vmul.f32 %v1092, %v985
        %v1109 = vmul.f32 %v1093, %v989
        %v1110 = vadd.f32 %v1094, %v1102
        %v1111 = vadd.f32 %v1095, %v1103
        %v1112 = vadd.f32 %v1096, %v1104
        %v1113 = vadd.f32 %v1097, %v1105
        %v1114 = vadd.f32 %v1098, %v1106
        %v1115 = vadd.f32 %v1099, %v1107
        %v1116 = vadd.f32 %v1100, %v1108
        %v1117 = vadd.f32 %v1101, %v1109
        %v1118 = vcombine.low %v1006, %v1008
        %v1120 = vunpack.c.l.s4 1983009808
        %v1121 = vunpack.c.0.s8 %v1120
        %v1122 = vlaneseq
        %v1123 = vshrl.u32 %v1122, 7
        %v1124 = vsub.s32 %v1121, %v1123
        %v1125 = vrot.slane %v1118, %v1124
        %v1126 = vcombine.low %v1007, %v1009
        %v1128 = vunpack.c.l.s4 1983009808
        %v1129 = vunpack.c.0.s8 %v1128
        %v1130 = vlaneseq
        %v1131 = vshrl.u32 %v1130, 7
        %v1132 = vsub.s32 %v1129, %v1131
        %v1133 = vrot.slane %v1126, %v1132
        %v1134 = vcombine.low %v1010, %v1012
        %v1136 = vunpack.c.l.s4 1983009808
        %v1137 = vunpack.c.0.s8 %v1136
        %v1138 = vlaneseq
        %v1139 = vshrl.u32 %v1138, 7
        %v1140 = vsub.s32 %v1137, %v1139
        %v1141 = vrot.slane %v1134, %v1140
        %v1142 = vcombine.low %v1011, %v1013
        %v1144 = vunpack.c.l.s4 1983009808
        %v1145 = vunpack.c.0.s8 %v1144
        %v1146 = vlaneseq
        %v1147 = vshrl.u32 %v1146, 7
        %v1148 = vsub.s32 %v1145, %v1147
        %v1149 = vrot.slane %v1142, %v1148
        %v1150 = vcombine.low %v1125, %v1133
        %v1151 = vcombine.high %v1125, %v1133
        %v1153 = vunpack.c.l.s4 1934713408
        %v1154 = vunpack.c.0.s8 %v1153
        %v1155 = vlaneseq
        %v1156 = vshrl.u32 %v1155, 7
        %v1157 = vsub.s32 %v1154, %v1156
        %v1158 = vrot.slane %v1150, %v1157
        %v1160 = vunpack.c.l.s4 1934713408
        %v1161 = vunpack.c.0.s8 %v1160
        %v1162 = vlaneseq
        %v1163 = vshrl.u32 %v1162, 7
        %v1164 = vsub.s32 %v1161, %v1163
        %v1165 = vrot.slane %v1151, %v1164
        %v1166 = vcombine.low %v1141, %v1149
        %v1167 = vcombine.high %v1141, %v1149
        %v1169 = vunpack.c.l.s4 1934713408
        %v1170 = vunpack.c.0.s8 %v1169
        %v1171 = vlaneseq
        %v1172 = vshrl.u32 %v1171, 7
        %v1173 = vsub.s32 %v1170, %v1172
        %v1174 = vrot.slane %v1166, %v1173
        %v1176 = vunpack.c.l.s4 1934713408
        %v1177 = vunpack.c.0.s8 %v1176
        %v1178 = vlaneseq
        %v1179 = vshrl.u32 %v1178, 7
        %v1180 = vsub.s32 %v1177, %v1179
        %v1181 = vrot.slane %v1167, %v1180
        %v1182 = vcombine.low %v1158, %v1174
        %v1183 = vcombine.high %v1158, %v1174
        %v1184 = vcombine.low %v1165, %v1181
        %v1185 = vcombine.high %v1165, %v1181
        %v1186 = vcombine.low %v1110, %v1112
        %v1188 = vunpack.c.l.s4 1983009808
        %v1189 = vunpack.c.0.s8 %v1188
        %v1190 = vlaneseq
        %v1191 = vshrl.u32 %v1190, 7
        %v1192 = vsub.s32 %v1189, %v1191
        %v1193 = vrot.slane %v1186, %v1192
        %v1194 = vcombine.low %v1111, %v1113
        %v1196 = vunpack.c.l.s4 1983009808
        %v1197 = vunpack.c.0.s8 %v1196
        %v1198 = vlaneseq
        %v1199 = vshrl.u32 %v1198, 7
        %v1200 = vsub.s32 %v1197, %v1199
        %v1201 = vrot.slane %v1194, %v1200
        %v1202 = vcombine.low %v1114, %v1116
        %v1204 = vunpack.c.l.s4 1983009808
        %v1205 = vunpack.c.0.s8 %v1204
        %v1206 = vlaneseq
        %v1207 = vshrl.u32 %v1206, 7
        %v1208 = vsub.s32 %v1205, %v1207
        %v1209 = vrot.slane %v1202, %v1208
        %v1210 = vcombine.low %v1115, %v1117
        %v1212 = vunpack.c.l.s4 1983009808
        %v1213 = vunpack.c.0.s8 %v1212
        %v1214 = vlaneseq
        %v1215 = vshrl.u32 %v1214, 7
        %v1216 = vsub.s32 %v1213, %v1215
        %v1217 = vrot.slane %v1210, %v1216
        %v1218 = vcombine.low %v1193, %v1201
        %v1220 = vunpack.c.l.s4 1934713408
        %v1221 = vunpack.c.0.s8 %v1220
        %v1222 = vlaneseq
        %v1223 = vshrl.u32 %v1222, 7
        %v1224 = vsub.s32 %v1221, %v1223
        %v1225 = vrot.slane %v1218, %v1224
        %v1226 = vcombine.low %v1209, %v1217
        %v1228 = vunpack.c.l.s4 1934713408
        %v1229 = vunpack.c.0.s8 %v1228
        %v1230 = vlaneseq
        %v1231 = vshrl.u32 %v1230, 7
        %v1232 = vsub.s32 %v1229, %v1231
        %v1233 = vrot.slane %v1226, %v1232
        %v1234 = vcombine.low %v1225, %v1233
        %v1235 = vcombine.high %v1225, %v1233
        %v1236 = vcombine.low %v801, %v808
        %v1238 = vunpack.c.l.s4 1983009808
        %v1239 = vunpack.c.0.s8 %v1238
        %v1240 = vlaneseq
        %v1241 = vshrl.u32 %v1240, 7
        %v1242 = vsub.s32 %v1239, %v1241
        %v1243 = vrot.slane %v1236, %v1242
        %v1244 = vcombine.low %v825, %v826
        %v1246 = vunpack.c.l.s4 1983009808
        %v1247 = vunpack.c.0.s8 %v1246
        %v1248 = vlaneseq
        %v1249 = vshrl.u32 %v1248, 7
        %v1250 = vsub.s32 %v1247, %v1249
        %v1251 = vrot.slane %v1244, %v1250
        %v1252 = vcombine.low %v817, %v824
        %v1254 = vunpack.c.l.s4 1983009808
        %v1255 = vunpack.c.0.s8 %v1254
        %v1256 = vlaneseq
        %v1257 = vshrl.u32 %v1256, 7
        %v1258 = vsub.s32 %v1255, %v1257
        %v1259 = vrot.slane %v1252, %v1258
        %v1260 = vcombine.low %v827, %v828
        %v1262 = vunpack.c.l.s4 1983009808
        %v1263 = vunpack.c.0.s8 %v1262
        %v1264 = vlaneseq
        %v1265 = vshrl.u32 %v1264, 7
        %v1266 = vsub.s32 %v1263, %v1265
        %v1267 = vrot.slane %v1260, %v1266
        %v1268 = vcombine.low %v1243, %v1251
        %v1270 = vunpack.c.l.s4 1934713408
        %v1271 = vunpack.c.0.s8 %v1270
        %v1272 = vlaneseq
        %v1273 = vshrl.u32 %v1272, 7
        %v1274 = vsub.s32 %v1271, %v1273
        %v1275 = vrot.slane %v1268, %v1274
        %v1276 = vcombine.low %v1259, %v1267
        %v1278 = vunpack.c.l.s4 1934713408
        %v1279 = vunpack.c.0.s8 %v1278
        %v1280 = vlaneseq
        %v1281 = vshrl.u32 %v1280, 7
        %v1282 = vsub.s32 %v1279, %v1281
        %v1283 = vrot.slane %v1276, %v1282
        %v1284 = vcombine.low %v1275, %v1283
        %v1285 = vcombine.high %v1275, %v1283
        %v1286 = vpack.c.bf16 %v1183, %v1182
        %v1287 = vpack.c.bf16 %v1185, %v1184
        %v1288 = vpack.c.bf16 %v1234, %v1234
        %v1289 = vpack.c.bf16 %v1235, %v1235
        %vm1290 = vcmask 64512
        %v1292 = vsel %vm1290, %v1286, 0
        %v1295 = vsel %vm1290, %v1288, 0
        %1297 = vmatprep.subr.bf16.mxu0 0
        %1298 = vmatpush1.bf16.xpose.msra.mxu0 %v1295
        %1299 = vmatprep.subr.bf16.mxu0 0
        %1300 = vmatpush1.bf16.xpose.msra.mxu0 0
        %1301 = vmatprep.subr.bf16.mxu0 0
        %1302 = vmatpush1.bf16.xpose.msra.mxu0 0
        %1303 = vmatprep.subr.bf16.mxu0 0
        %1304 = vmatpush1.bf16.xpose.msra.mxu0 0
        %1305 = vmatprep.subr.bf16.mxu0 0
        %1306 = vmatpush1.bf16.xpose.msra.mxu0 0
        %1307 = vmatprep.subr.bf16.mxu0 0
        %1308 = vmatpush1.bf16.xpose.msra.mxu0 0
        %1309 = vmatprep.subr.bf16.mxu0 0
        %1310 = vmatpush1.bf16.xpose.msra.mxu0 0
        %1311 = vmatprep.subr.bf16.mxu0 0
        %1312 = vmatpush1.bf16.xpose.msra.mxu0 0
        %1313 = vmatprep.subr.bf16.mxu0 0
        %1314 = vmatpush1.bf16.xpose.msra.mxu0 0
        %1315 = vmatprep.subr.bf16.mxu0 0
        %1316 = vmatpush1.bf16.xpose.msra.mxu0 0
        %1317 = vmatprep.subr.bf16.mxu0 0
        %1318 = vmatpush1.bf16.xpose.msra.mxu0 0
        %1319 = vmatprep.subr.bf16.mxu0 0
        %1320 = vmatpush1.bf16.xpose.msra.mxu0 0
        %1321 = vmatprep.subr.bf16.mxu0 0
        %1322 = vmatpush1.bf16.xpose.msra.mxu0 0
        %1323 = vmatprep.subr.bf16.mxu0 0
        %1324 = vmatpush1.bf16.xpose.msra.mxu0 0
        %1325 = vmatprep.subr.bf16.mxu0 0
        %1326 = vmatpush1.bf16.xpose.msra.mxu0 0
        %1327 = vmatprep.subr.bf16.mxu0 0
        %1328 = vmatpush1.bf16.xpose.msra.mxu0 0
        %1329 = vmatprep.mubr.bf16.mxu0 0
        %1330 = vmatmul.mubr.bf16.gmra.mrb[0].mxu0 %v1292
        %v1331 = vpop.f32.mrb[0].mxu0
        %v1332 = vadd.f32 0.0, %v1331
        %v1333 = vpop.f32.mrb[0].mxu0
        %v1334 = vpop.f32.mrb[0].mxu0
        %v1335 = vadd.f32 0.0, %v1334
        %v1336 = vpop.f32.mrb[0].mxu0
        %1337 = vdwg.mxu0
        %v1339 = vsel %vm1290, %v1287, 0
        %v1342 = vsel %vm1290, %v1289, 0
        %1344 = vmatprep.subr.bf16.mxu0 0
        %1345 = vmatpush1.bf16.xpose.msra.mxu0 %v1342
        %1346 = vmatprep.subr.bf16.mxu0 0
        %1347 = vmatpush1.bf16.xpose.msra.mxu0 0
        %1348 = vmatprep.subr.bf16.mxu0 0
        %1349 = vmatpush1.bf16.xpose.msra.mxu0 0
        %1350 = vmatprep.subr.bf16.mxu0 0
        %1351 = vmatpush1.bf16.xpose.msra.mxu0 0
        %1352 = vmatprep.subr.bf16.mxu0 0
        %1353 = vmatpush1.bf16.xpose.msra.mxu0 0
        %1354 = vmatprep.subr.bf16.mxu0 0
        %1355 = vmatpush1.bf16.xpose.msra.mxu0 0
        %1356 = vmatprep.subr.bf16.mxu0 0
        %1357 = vmatpush1.bf16.xpose.msra.mxu0 0
        %1358 = vmatprep.subr.bf16.mxu0 0
        %1359 = vmatpush1.bf16.xpose.msra.mxu0 0
        %1360 = vmatprep.subr.bf16.mxu0 0
        %1361 = vmatpush1.bf16.xpose.msra.mxu0 0
        %1362 = vmatprep.subr.bf16.mxu0 0
        %1363 = vmatpush1.bf16.xpose.msra.mxu0 0
        %1364 = vmatprep.subr.bf16.mxu0 0
        %1365 = vmatpush1.bf16.xpose.msra.mxu0 0
        %1366 = vmatprep.subr.bf16.mxu0 0
        %1367 = vmatpush1.bf16.xpose.msra.mxu0 0
        %1368 = vmatprep.subr.bf16.mxu0 0
        %1369 = vmatpush1.bf16.xpose.msra.mxu0 0
        %1370 = vmatprep.subr.bf16.mxu0 0
        %1371 = vmatpush1.bf16.xpose.msra.mxu0 0
        %1372 = vmatprep.subr.bf16.mxu0 0
        %1373 = vmatpush1.bf16.xpose.msra.mxu0 0
        %1374 = vmatprep.subr.bf16.mxu0 0
        %1375 = vmatpush1.bf16.xpose.msra.mxu0 0
        %1376 = vmatprep.mubr.bf16.mxu0 0
        %1377 = vmatmul.mubr.bf16.gmra.mrb[0].mxu0 %v1339
        %v1378 = vpop.f32.mrb[0].mxu0
        %v1379 = vadd.f32 0.0, %v1378
        %v1380 = vpop.f32.mrb[0].mxu0
        %v1381 = vpop.f32.mrb[0].mxu0
        %v1382 = vadd.f32 0.0, %v1381
        %v1383 = vpop.f32.mrb[0].mxu0
        %1384 = vdwg.mxu0
        %v1385 = vsel %vm1290, %v1332, -inf
        %1386 = vmax.xlane.f32.xlu0 %v1385
        %v1387 = vpop.xlane.xlu0 %1386
        %v1388 = vsel %vm1290, %v1335, -inf
        %1389 = vmax.xlane.f32.xlu0 %v1388
        %v1390 = vpop.xlane.xlu0 %1389
        %v1391 = vsel %vm1290, %v1379, -inf
        %1392 = vmax.xlane.f32.xlu0 %v1391
        %v1393 = vpop.xlane.xlu0 %1392
        %v1394 = vsel %vm1290, %v1382, -inf
        %1395 = vmax.xlane.f32.xlu0 %v1394
        %v1396 = vpop.xlane.xlu0 %1395
        %v1397 = vsub.f32 %v1332, %v1387
        %v1398 = vsub.f32 %v1335, %v1390
        %v1399 = vsub.f32 %v1379, %v1393
        %v1400 = vsub.f32 %v1382, %v1396
        %v1401 = vmul.f32 %v1397, 1.442695
        %v1402 = vpow.pop %v1401
        %v1403 = vmul.f32 %v1398, 1.442695
        %v1404 = vpow.pop %v1403
        %v1405 = vmul.f32 %v1399, 1.442695
        %v1406 = vpow.pop %v1405
        %v1407 = vmul.f32 %v1400, 1.442695
        %v1408 = vpow.pop %v1407
        %v1409 = vsel %vm1290, %v1402, 0.0
        %1410 = vadd.xlane.f32.xlu0 %v1409
        %v1411 = vpop.xlane.xlu0 %1410
        %v1412 = vsel %vm1290, %v1404, 0.0
        %1413 = vadd.xlane.f32.xlu0 %v1412
        %v1414 = vpop.xlane.xlu0 %1413
        %v1415 = vsel %vm1290, %v1406, 0.0
        %1416 = vadd.xlane.f32.xlu0 %v1415
        %v1417 = vpop.xlane.xlu0 %1416
        %v1418 = vsel %vm1290, %v1408, 0.0
        %1419 = vadd.xlane.f32.xlu0 %v1418
        %v1420 = vpop.xlane.xlu0 %1419
        %v1421 = vrcp.pop %v1411
        %v1422 = vrcp.pop %v1414
        %v1423 = vrcp.pop %v1417
        %v1424 = vrcp.pop %v1420
        %v1425 = vmul.f32 %v1402, %v1421
        %v1426 = vmul.f32 %v1404, %v1422
        %v1427 = vmul.f32 %v1406, %v1423
        %v1428 = vmul.f32 %v1408, %v1424
        %v1429 = vpack.c.bf16 %v1426, %v1425
        %v1430 = vpack.c.bf16 %v1428, %v1427
        %v1431 = vpack.c.bf16 %v1284, %v1284
        %v1432 = vpack.c.bf16 %v1285, %v1285
        %v1434 = vsel %vm1290, %v1429, 0
        %vm1436 = vcmask 1043456
        %v1438 = vsel %vm1436, %v1431, 0
        %1440 = vmatprep.subr.bf16.mxu0 0
        %1441 = vmatpush1.bf16.msra.mxu0 %v1438
        %1442 = vmatprep.subr.bf16.mxu0 0
        %1443 = vmatpush1.bf16.msra.mxu0 0
        %1444 = vmatprep.subr.bf16.mxu0 0
        %1445 = vmatpush1.bf16.msra.mxu0 0
        %1446 = vmatprep.subr.bf16.mxu0 0
        %1447 = vmatpush1.bf16.msra.mxu0 0
        %1448 = vmatprep.subr.bf16.mxu0 0
        %1449 = vmatpush1.bf16.msra.mxu0 0
        %1450 = vmatprep.subr.bf16.mxu0 0
        %1451 = vmatpush1.bf16.msra.mxu0 0
        %1452 = vmatprep.subr.bf16.mxu0 0
        %1453 = vmatpush1.bf16.msra.mxu0 0
        %1454 = vmatprep.subr.bf16.mxu0 0
        %1455 = vmatpush1.bf16.msra.mxu0 0
        %1456 = vmatprep.subr.bf16.mxu0 0
        %1457 = vmatpush1.bf16.msra.mxu0 0
        %1458 = vmatprep.subr.bf16.mxu0 0
        %1459 = vmatpush1.bf16.msra.mxu0 0
        %1460 = vmatprep.subr.bf16.mxu0 0
        %1461 = vmatpush1.bf16.msra.mxu0 0
        %1462 = vmatprep.subr.bf16.mxu0 0
        %1463 = vmatpush1.bf16.msra.mxu0 0
        %1464 = vmatprep.subr.bf16.mxu0 0
        %1465 = vmatpush1.bf16.msra.mxu0 0
        %1466 = vmatprep.subr.bf16.mxu0 0
        %1467 = vmatpush1.bf16.msra.mxu0 0
        %1468 = vmatprep.subr.bf16.mxu0 0
        %1469 = vmatpush1.bf16.msra.mxu0 0
        %1470 = vmatprep.subr.bf16.mxu0 0
        %1471 = vmatpush1.bf16.msra.mxu0 0
        %1472 = vmatprep.mubr.bf16.mxu0 0
        %1473 = vmatmul.mubr.bf16.gmra.mrb[0].mxu0 %v1434
        %v1474 = vpop.f32.mrb[0].mxu0
        %v1475 = vadd.f32 0.0, %v1474
        %v1476 = vpop.f32.mrb[0].mxu0
        %v1477 = vpop.f32.mrb[0].mxu0
        %v1478 = vadd.f32 0.0, %v1477
        %v1479 = vpop.f32.mrb[0].mxu0
        %1480 = vdwg.mxu0
        %v1482 = vsel %vm1290, %v1430, 0
        %v1485 = vsel %vm1436, %v1432, 0
        %1487 = vmatprep.subr.bf16.mxu0 0
        %1488 = vmatpush1.bf16.msra.mxu0 %v1485
        %1489 = vmatprep.subr.bf16.mxu0 0
        %1490 = vmatpush1.bf16.msra.mxu0 0
        %1491 = vmatprep.subr.bf16.mxu0 0
        %1492 = vmatpush1.bf16.msra.mxu0 0
        %1493 = vmatprep.subr.bf16.mxu0 0
        %1494 = vmatpush1.bf16.msra.mxu0 0
        %1495 = vmatprep.subr.bf16.mxu0 0
        %1496 = vmatpush1.bf16.msra.mxu0 0
        %1497 = vmatprep.subr.bf16.mxu0 0
        %1498 = vmatpush1.bf16.msra.mxu0 0
        %1499 = vmatprep.subr.bf16.mxu0 0
        %1500 = vmatpush1.bf16.msra.mxu0 0
        %1501 = vmatprep.subr.bf16.mxu0 0
        %1502 = vmatpush1.bf16.msra.mxu0 0
        %1503 = vmatprep.subr.bf16.mxu0 0
        %1504 = vmatpush1.bf16.msra.mxu0 0
        %1505 = vmatprep.subr.bf16.mxu0 0
        %1506 = vmatpush1.bf16.msra.mxu0 0
        %1507 = vmatprep.subr.bf16.mxu0 0
        %1508 = vmatpush1.bf16.msra.mxu0 0
        %1509 = vmatprep.subr.bf16.mxu0 0
        %1510 = vmatpush1.bf16.msra.mxu0 0
        %1511 = vmatprep.subr.bf16.mxu0 0
        %1512 = vmatpush1.bf16.msra.mxu0 0
        %1513 = vmatprep.subr.bf16.mxu0 0
        %1514 = vmatpush1.bf16.msra.mxu0 0
        %1515 = vmatprep.subr.bf16.mxu0 0
        %1516 = vmatpush1.bf16.msra.mxu0 0
        %1517 = vmatprep.subr.bf16.mxu0 0
        %1518 = vmatpush1.bf16.msra.mxu0 0
        %1519 = vmatprep.mubr.bf16.mxu0 0
        %1520 = vmatmul.mubr.bf16.gmra.mrb[0].mxu0 %v1482
        %v1521 = vpop.f32.mrb[0].mxu0
        %v1522 = vadd.f32 0.0, %v1521
        %v1523 = vpop.f32.mrb[0].mxu0
        %v1524 = vpop.f32.mrb[0].mxu0
        %v1525 = vadd.f32 0.0, %v1524
        %v1526 = vpop.f32.mrb[0].mxu0
        %1527 = vdwg.mxu0
        %v1528 = vcombine.low %v1475, %v1522
        %v1529 = vcombine.high %v1475, %v1522
        %v1531 = vunpack.c.l.s4 1983009808
        %v1532 = vunpack.c.0.s8 %v1531
        %v1533 = vlaneseq
        %v1534 = vshrl.u32 %v1533, 7
        %v1535 = vsub.s32 %v1532, %v1534
        %v1536 = vrot.slane %v1528, %v1535
        %v1538 = vunpack.c.l.s4 1983009808
        %v1539 = vunpack.c.0.s8 %v1538
        %v1540 = vlaneseq
        %v1541 = vshrl.u32 %v1540, 7
        %v1542 = vsub.s32 %v1539, %v1541
        %v1543 = vrot.slane %v1529, %v1542
        %v1544 = vcombine.low %v1478, %v1525
        %v1545 = vcombine.high %v1478, %v1525
        %v1547 = vunpack.c.l.s4 1983009808
        %v1548 = vunpack.c.0.s8 %v1547
        %v1549 = vlaneseq
        %v1550 = vshrl.u32 %v1549, 7
        %v1551 = vsub.s32 %v1548, %v1550
        %v1552 = vrot.slane %v1544, %v1551
        %v1554 = vunpack.c.l.s4 1983009808
        %v1555 = vunpack.c.0.s8 %v1554
        %v1556 = vlaneseq
        %v1557 = vshrl.u32 %v1556, 7
        %v1558 = vsub.s32 %v1555, %v1557
        %v1559 = vrot.slane %v1545, %v1558
        %v1560 = vcombine.low %v1536, %v1552
        %v1561 = vcombine.high %v1536, %v1552
        %v1563 = vunpack.c.l.s4 1934713408
        %v1564 = vunpack.c.0.s8 %v1563
        %v1565 = vlaneseq
        %v1566 = vshrl.u32 %v1565, 7
        %v1567 = vsub.s32 %v1564, %v1566
        %v1568 = vrot.slane %v1560, %v1567
        %v1570 = vunpack.c.l.s4 1934713408
        %v1571 = vunpack.c.0.s8 %v1570
        %v1572 = vlaneseq
        %v1573 = vshrl.u32 %v1572, 7
        %v1574 = vsub.s32 %v1571, %v1573
        %v1575 = vrot.slane %v1561, %v1574
        %v1576 = vcombine.low %v1543, %v1559
        %v1577 = vcombine.high %v1543, %v1559
        %v1579 = vunpack.c.l.s4 1934713408
        %v1580 = vunpack.c.0.s8 %v1579
        %v1581 = vlaneseq
        %v1582 = vshrl.u32 %v1581, 7
        %v1583 = vsub.s32 %v1580, %v1582
        %v1584 = vrot.slane %v1576, %v1583
        %v1586 = vunpack.c.l.s4 1934713408
        %v1587 = vunpack.c.0.s8 %v1586
        %v1588 = vlaneseq
        %v1589 = vshrl.u32 %v1588, 7
        %v1590 = vsub.s32 %v1587, %v1589
        %v1591 = vrot.slane %v1577, %v1590
        %v1592 = vcombine.high %v1568, 0.0
        %v1593 = vcombine.high %v1575, 0.0
        %v1594 = vcombine.high %v1584, 0.0
        %v1595 = vcombine.high %v1591, 0.0
        %v1596 = vcombine.low %v1568, %v1575
        %v1598 = vunpack.c.l.s4 1983009808
        %v1599 = vunpack.c.0.s8 %v1598
        %v1600 = vlaneseq
        %v1601 = vshrl.u32 %v1600, 7
        %v1602 = vsub.s32 %v1599, %v1601
        %v1603 = vrot.slane %v1596, %v1602
        %v1604 = vcombine.low %v1592, %v1593
        %v1606 = vunpack.c.l.s4 1983009808
        %v1607 = vunpack.c.0.s8 %v1606
        %v1608 = vlaneseq
        %v1609 = vshrl.u32 %v1608, 7
        %v1610 = vsub.s32 %v1607, %v1609
        %v1611 = vrot.slane %v1604, %v1610
        %v1612 = vcombine.low %v1584, %v1591
        %v1614 = vunpack.c.l.s4 1983009808
        %v1615 = vunpack.c.0.s8 %v1614
        %v1616 = vlaneseq
        %v1617 = vshrl.u32 %v1616, 7
        %v1618 = vsub.s32 %v1615, %v1617
        %v1619 = vrot.slane %v1612, %v1618
        %v1620 = vcombine.low %v1594, %v1595
        %v1622 = vunpack.c.l.s4 1983009808
        %v1623 = vunpack.c.0.s8 %v1622
        %v1624 = vlaneseq
        %v1625 = vshrl.u32 %v1624, 7
        %v1626 = vsub.s32 %v1623, %v1625
        %v1627 = vrot.slane %v1620, %v1626
        %v1628 = vcombine.low %v1603, %v1611
        %v1629 = vcombine.high %v1603, %v1611
        %v1631 = vunpack.c.l.s4 1934713408
        %v1632 = vunpack.c.0.s8 %v1631
        %v1633 = vlaneseq
        %v1634 = vshrl.u32 %v1633, 7
        %v1635 = vsub.s32 %v1632, %v1634
        %v1636 = vrot.slane %v1628, %v1635
        %v1638 = vunpack.c.l.s4 1934713408
        %v1639 = vunpack.c.0.s8 %v1638
        %v1640 = vlaneseq
        %v1641 = vshrl.u32 %v1640, 7
        %v1642 = vsub.s32 %v1639, %v1641
        %v1643 = vrot.slane %v1629, %v1642
        %v1644 = vcombine.low %v1619, %v1627
        %v1645 = vcombine.high %v1619, %v1627
        %v1647 = vunpack.c.l.s4 1934713408
        %v1648 = vunpack.c.0.s8 %v1647
        %v1649 = vlaneseq
        %v1650 = vshrl.u32 %v1649, 7
        %v1651 = vsub.s32 %v1648, %v1650
        %v1652 = vrot.slane %v1644, %v1651
        %v1654 = vunpack.c.l.s4 1934713408
        %v1655 = vunpack.c.0.s8 %v1654
        %v1656 = vlaneseq
        %v1657 = vshrl.u32 %v1656, 7
        %v1658 = vsub.s32 %v1655, %v1657
        %v1659 = vrot.slane %v1645, %v1658
        %v1660 = vcombine.low %v1636, %v1652
        %v1661 = vcombine.high %v1636, %v1652
        %v1662 = vcombine.low %v1643, %v1659
        %v1663 = vcombine.high %v1643, %v1659
        %1665 = vrot.lane.b32.xlu0 %v1661, 8
        %v1666 = vpop.permute.xlu0 %1665
        %1669 = vrot.lane.b32.xlu0 %v1662, 16
        %v1670 = vpop.permute.xlu0 %1669
        %1673 = vrot.lane.b32.xlu0 %v1663, 24
        %v1674 = vpop.permute.xlu0 %1673
        %v1676 = vsel %vm1290, %v1660, %v1666
        %vm1677 = vcmask 130048
        %v1678 = vsel %vm1677, %v1676, %v1670
        %vm1679 = vcmask 195584
        %v1680 = vsel %vm1679, %v1678, %v1674
        %v1681 = vpack.c.bf16 %v1680, %v1680
        %v1682 = vld [vmem:[%s5] sm:$0xf]
        %v1683 = vld [vmem:[%s5 + $0x4] sm:$0xf]
        %v1684 = vld [vmem:[%s5 + $0x8] sm:$0xf]
        %v1685 = vld [vmem:[%s5 + $0xc] sm:$0xf]
        %v1690 = vunpack.c.l.b16 %v1682
        %v1691 = vunpack.c.l.b16 %v1683
        %v1692 = vunpack.c.l.b16 %v1684
        %v1693 = vunpack.c.l.b16 %v1685
        %v1694 = vpack.c.b16 %v1691, %v1690
        %v1695 = vpack.c.b16 %v1693, %v1692
        %v1699 = vsel %vm305, %v1681, 0
        %1701 = vmatprep.subr.bf16.mxu0 0
        %1702 = vmatpush1.bf16.msra.mxu0 %v1694
        %1703 = vmatprep.subr.bf16.mxu0 0
        %1704 = vmatpush1.bf16.msra.mxu0 %v1695
        %1705 = vmatprep.subr.bf16.mxu0 0
        %1706 = vmatpush1.bf16.msra.mxu0 0
        %1707 = vmatprep.subr.bf16.mxu0 0
        %1708 = vmatpush1.bf16.msra.mxu0 0
        %1709 = vmatprep.subr.bf16.mxu0 0
        %1710 = vmatpush1.bf16.msra.mxu0 0
        %1711 = vmatprep.subr.bf16.mxu0 0
        %1712 = vmatpush1.bf16.msra.mxu0 0
        %1713 = vmatprep.subr.bf16.mxu0 0
        %1714 = vmatpush1.bf16.msra.mxu0 0
        %1715 = vmatprep.subr.bf16.mxu0 0
        %1716 = vmatpush1.bf16.msra.mxu0 0
        %1717 = vmatprep.subr.bf16.mxu0 0
        %1718 = vmatpush1.bf16.msra.mxu0 0
        %1719 = vmatprep.subr.bf16.mxu0 0
        %1720 = vmatpush1.bf16.msra.mxu0 0
        %1721 = vmatprep.subr.bf16.mxu0 0
        %1722 = vmatpush1.bf16.msra.mxu0 0
        %1723 = vmatprep.subr.bf16.mxu0 0
        %1724 = vmatpush1.bf16.msra.mxu0 0
        %1725 = vmatprep.subr.bf16.mxu0 0
        %1726 = vmatpush1.bf16.msra.mxu0 0
        %1727 = vmatprep.subr.bf16.mxu0 0
        %1728 = vmatpush1.bf16.msra.mxu0 0
        %1729 = vmatprep.subr.bf16.mxu0 0
        %1730 = vmatpush1.bf16.msra.mxu0 0
        %1731 = vmatprep.subr.bf16.mxu0 0
        %1732 = vmatpush1.bf16.msra.mxu0 0
        %1733 = vmatprep.mubr.bf16.mxu0 0
        %1734 = vmatmul.mubr.bf16.gmra.mrb[0].mxu0 %v1699
        %v1735 = vpop.f32.mrb[0].mxu0
        %v1736 = vadd.f32 0.0, %v1735
        %v1737 = vpop.f32.mrb[0].mxu0
        %v1738 = vpop.f32.mrb[0].mxu0
        %v1739 = vpop.f32.mrb[0].mxu0
        %1740 = vdwg.mxu0
        %v1741 = vadd.f32 %v303, %v1736
        %v1742 = vpack.c.bf16 %v1741, %v1741
        %vm1743 = vcmask 257024
        %1744 = vst.msk [vmem:[%s296] sm:$0xf] %vm1743, %v1742
        %s1745 = sand.u32 %s203, 1
        %s1746 = scalar_lea.sflag [#allocation3], %s1745
        %s1747 = sand.u32 %s203, 1
        %s1748 = smul.addr %s1747, 4
        %s1749 = scalar_lea.vmem [#allocation2], %s1748
        // Predicated region
        $region53: #{tpu_custom_call.1} parent=51 // pred_check
          %p1750 = pneg %p213
        $region54: #{tpu_custom_call.1} parent=51 // pred_check_branch
          %1752 = sbr.rel (%p1750) target = $region56
        $region55: #{tpu_custom_call.1} parent=51 // pred_region
          %s1754 = ssub.s32 64, 64
          %1755 = vsyncadd %s1746, %s1754
          %s1756 = smul.addr %s22, 64
          %s1757 = scalar_lea.hbm %s8, %s1756
          %s1759 = sshll.u32 %s1749, 4
          %s1760 = int_to_ptr.vmem [resolvable:$true] %s1759
          %1762 = dma.vmem_to_hbm [thread:$0]  %s1760, 64, %s1757, %s1746
        $region56: #{tpu_custom_call.1} parent=51 // pred_fallthru
          _
      $region52: #{tpu_custom_call.1} parent=5 // pred_fallthru
        _
      %p1763 = scmp.le.s32.totalorder 2, %s17
      // Predicated region
      $region57: #{tpu_custom_call.1} parent=5 // pred_check
        %p1764 = pneg %p1763
      $region58: #{tpu_custom_call.1} parent=5 // pred_check_branch
        %1766 = sbr.rel (%p1764) target = $region60
      $region59: #{tpu_custom_call.1} parent=5 // pred_region
        %s1767 = ssub.s32 %s17, 2
        // Predicated region
        $region61: #{tpu_custom_call.1} parent=59 // pred_check
          %p1768 = pneg %p219
        $region62: #{tpu_custom_call.1} parent=59 // pred_check_branch
          %1770 = sbr.rel (%p1768) target = $region64
        $region63: #{tpu_custom_call.1} parent=59 // pred_region
          %s1771 = sand.u32 %s204, 1
          %s1772 = scalar_lea.sflag [#allocation3], %s1771
          %s1773 = sand.u32 %s204, 1
          %s1774 = smul.addr %s1773, 4
          %s1775 = scalar_lea.vmem [#allocation2], %s1774
          %1776 = dma.done %s1772, 64
        $region64: #{tpu_custom_call.1} parent=59 // pred_fallthru
          _
      $region60: #{tpu_custom_call.1} parent=5 // pred_fallthru
        _
    $region6: #{tpu_custom_call.1} parent=1 // loop_footer
      %s21 = sadd.s32 1, %s17
    $region7: #{tpu_custom_call.1} parent=1 // loop_footer_branch
      %16 = sbr.rel target = $region3
    $region8: #{tpu_custom_call.1} parent=1 // loop_exit
      _
    %1777 = vsyncpa [#allocation3], 1
    %s1778 = scalar_lea.sflag [#allocation3], 1
    %1779 = vsyncpa %s1778, 1

</llo_original>
